<compile_context>
chip_gen: v5e
topology: v5e:2x2
jax: 0.10.0
libtpu: 0.0.40
codegen_flags: <defaults>
</compile_context>

<pallas_src>
import math
import numpy as np
import jax
import jax.numpy as jnp
from jax.experimental import pallas as pl
from jax.experimental.pallas import tpu as pltpu


def _mish(v):
    # mish(v) = v * tanh(softplus(v)) with one exp + one approx reciprocal:
    #   v >= 0: tanh(softplus(v)) = (1 + 2u) / (1 + 2u + 2u^2),  u = exp(-v)
    #   v <  0: tanh(softplus(v)) = (2u + u^2) / (2 + 2u + u^2), u = exp(v)
    u = jnp.exp(-jnp.abs(v))
    pos = v >= 0.0
    num = jnp.where(pos, 1.0 + 2.0 * u, u * (2.0 + u))
    den = jnp.where(pos, 1.0 + 2.0 * u + 2.0 * u * u, 2.0 + u * (2.0 + u))
    return v * num * pl.reciprocal(den, approx=True)


def _sigmoid(v):
    # numerically stable sigmoid with one exp + one approx reciprocal
    u = jnp.exp(-jnp.abs(v))
    num = jnp.where(v >= 0.0, 1.0, u)
    return num * pl.reciprocal(1.0 + u, approx=True)


def make_kernel(n_heads):
    def kernel(mel_ref, mask_ref, fc1_ref, spec_ref, convw_ref, convb_ref,
               wq_ref, wk_ref, wv_ref, wo_ref, lng_ref, lnb_ref, fc2_ref,
               out_ref):
        f32 = jnp.float32
        bf16 = jnp.bfloat16
        T = mel_ref.shape[1]
        D = fc1_ref.shape[1]
        Ls = spec_ref.shape[0]
        Lt = convw_ref.shape[0]
        KD = convw_ref.shape[1]
        K = KD // D
        La = wq_ref.shape[0]
        d_k = D // n_heads
        pad = (K - 1) // 2

        x = mel_ref[0]                         # (T, n_mel) current batch element
        key_pad = mask_ref[0]                  # (1, T) 1.0 where key is padded
        add_mask = key_pad * jnp.float32(-1e30)  # hoisted additive attention mask

        # ---- fc_1 (bf16 matmul, f32 accumulate) ----
        h = jnp.dot(x.astype(bf16), fc1_ref[...], preferred_element_type=f32)

        # ---- spectral stack: Mish(h @ W) ----
        for l in range(Ls):
            h = _mish(jnp.dot(h.astype(bf16), spec_ref[l],
                              preferred_element_type=f32))

        # ---- temporal stack: residual + GLU(Mish(conv1d(h))) via im2col ----
        for l in range(Lt):
            res = h
            hb = h.astype(bf16)
            zpad = jnp.zeros((pad, D), bf16)
            hp = jnp.concatenate([zpad, hb, zpad], axis=0)        # (T+K-1, D)
            # im2col: (T, K*D) tile; one deep-contraction matmul against the
            # (K*D, 2D) reshaped weight (reshaped once in the wrapper).
            cols = jnp.concatenate([hp[k:k + T, :] for k in range(K)], axis=-1)
            y = jnp.dot(cols, convw_ref[l], preferred_element_type=f32)
            y = y + convb_ref[l]                                   # bias once
            y = _mish(y)
            h = res + y[:, :D] * _sigmoid(y[:, D:])                # GLU(dim=-1)

        # ---- self-attention stack ----
        inv_temp = 1.0 / math.sqrt(d_k)
        for l in range(La):
            res = h
            hb = h.astype(bf16)
            q = jnp.dot(hb, wq_ref[l], preferred_element_type=f32)
            kk = jnp.dot(hb, wk_ref[l], preferred_element_type=f32)
            vv = jnp.dot(hb, wv_ref[l], preferred_element_type=f32)
            qb, kb, vb = q.astype(bf16), kk.astype(bf16), vv.astype(bf16)

            heads = []
            for hh in range(n_heads):
                lo, hi = hh * d_k, (hh + 1) * d_k
                s = jax.lax.dot_general(qb[:, lo:hi], kb[:, lo:hi],
                                        (((1,), (1,)), ((), ())),
                                        preferred_element_type=f32) * inv_temp
                s = s + add_mask                                   # mask keys
                s = s - jnp.max(s, axis=-1, keepdims=True)
                p = jnp.exp(s)
                p = p * pl.reciprocal(jnp.sum(p, axis=-1, keepdims=True),
                                      approx=True)
                heads.append(jnp.dot(p.astype(bf16), vb[:, lo:hi],
                                     preferred_element_type=f32))   # (T, d_k)

            # concat(heads) then ONE full-D output projection
            concat = jnp.concatenate(heads, axis=-1)                # (T, D)
            o = jnp.dot(concat.astype(bf16), wo_ref[l],
                        preferred_element_type=f32)

            z = o + res
            mu = jnp.mean(z, axis=-1, keepdims=True)
            var = jnp.mean((z - mu) ** 2, axis=-1, keepdims=True)
            zn = (z - mu) * jax.lax.rsqrt(var + 1e-5)
            h = res + zn * lng_ref[l] + lnb_ref[l]                  # outer residual

        # ---- fc_2 + mean over time, using mean(h @ W) == mean(h) @ W ----
        h_mean = jnp.mean(h, axis=0, keepdims=True)                 # (1, D)
        out_ref[0] = jnp.dot(h_mean.astype(bf16), fc2_ref[...],
                             preferred_element_type=f32)            # (1, D)

    return kernel


def mel_content_encoder(mel, mask, params, n_heads):
    B, T, M = mel.shape
    D = params["fc1_w"].shape[1]
    Lt, K = params["conv_w"].shape[0], params["conv_w"].shape[1]
    mask3 = mask.astype(jnp.float32).reshape(B, 1, T)

    bf16 = jnp.bfloat16
    # Matmul weights are cast to bf16 once (halves weight DMA, feeds MXU at
    # bf16 peak); biases / LN params stay f32. Conv weight reshaped for im2col.
    weights = [
        params["fc1_w"].astype(bf16),
        params["spec_w"].astype(bf16),
        params["conv_w"].reshape(Lt, K * D, 2 * D).astype(bf16),
        params["conv_b"].astype(jnp.float32),
        params["wq"].astype(bf16),
        params["wk"].astype(bf16),
        params["wv"].astype(bf16),
        params["wo"].astype(bf16),
        params["ln_g"].astype(jnp.float32),
        params["ln_b"].astype(jnp.float32),
        params["fc2_w"].astype(bf16),
    ]

    def full_spec(arr):
        zeros = (0,) * arr.ndim
        return pl.BlockSpec(arr.shape, lambda b: zeros)

    in_specs = [pl.BlockSpec((1, T, M), lambda b: (b, 0, 0)),
                pl.BlockSpec((1, 1, T), lambda b: (b, 0, 0))]
    in_specs += [full_spec(w) for w in weights]

    # Explicit scoped-VMEM budget: (double-buffered) weights + resident
    # activations with generous headroom, clamped to stay inside v7x's 64 MiB.
    weight_bytes = sum(int(np.prod(w.shape)) * w.dtype.itemsize for w in weights)
    act_bytes = 4 * T * (12 * D + M + T)       # rough resident-activation bound
    vmem_limit = int(min(48 * 1024 * 1024,
                         max(16 * 1024 * 1024, 8 * (weight_bytes + act_bytes))))

    return pl.pallas_call(
        make_kernel(n_heads),
        out_shape=jax.ShapeDtypeStruct((B, 1, D), jnp.float32),
        grid=(B,),
        in_specs=in_specs,
        out_specs=pl.BlockSpec((1, 1, D), lambda b: (b, 0, 0)),
        compiler_params=pltpu.CompilerParams(
            dimension_semantics=("parallel",),     # batch is independent
            vmem_limit_bytes=vmem_limit),
    )(mel, mask3, *weights)


def init_params(key, n_mel, d, n_spectral, n_temporal, n_attn, ksize):
    ks = jax.random.split(key, 12)

    def w(k, shape, fan_in):
        return jax.random.normal(k, shape, jnp.float32) / np.sqrt(fan_in)

    return {
        "fc1_w": w(ks[0], (n_mel, d), n_mel),
        "spec_w": w(ks[1], (n_spectral, d, d), d),
        "conv_w": w(ks[2], (n_temporal, ksize, d, 2 * d), ksize * d),
        "conv_b": 0.01 * jax.random.normal(ks[3], (n_temporal, 1, 2 * d), jnp.float32),
        "wq": w(ks[4], (n_attn, d, d), d),
        "wk": w(ks[5], (n_attn, d, d), d),
        "wv": w(ks[6], (n_attn, d, d), d),
        "wo": w(ks[7], (n_attn, d, d), d),
        "ln_g": jnp.ones((n_attn, 1, d), jnp.float32),
        "ln_b": jnp.zeros((n_attn, 1, d), jnp.float32),
        "fc2_w": w(ks[8], (d, d), d),
    }


def reference(mel, mask, params, n_heads):
    B, T, _ = mel.shape
    D = params["fc1_w"].shape[1]
    K = params["conv_w"].shape[1]
    pad = (K - 1) // 2
    d_k = D // n_heads

    def mish(v):
        return v * jnp.tanh(jax.nn.softplus(v))

    x = mel @ params["fc1_w"]
    for l in range(params["spec_w"].shape[0]):
        x = mish(x @ params["spec_w"][l])
    for l in range(params["conv_w"].shape[0]):
        res = x
        xp = jnp.pad(x, ((0, 0), (pad, pad), (0, 0)))
        y = jnp.zeros((B, T, 2 * D), jnp.float32) + params["conv_b"][l]
        for k in range(K):
            y = y + jnp.einsum("btd,de->bte", xp[:, k:k + T], params["conv_w"][l, k])
        y = mish(y)
        x = res + y[..., :D] * jax.nn.sigmoid(y[..., D:])
    for l in range(params["wq"].shape[0]):
        res = x
        q = (x @ params["wq"][l]).reshape(B, T, n_heads, d_k).transpose(0, 2, 1, 3)
        k_ = (x @ params["wk"][l]).reshape(B, T, n_heads, d_k).transpose(0, 2, 1, 3)
        v = (x @ params["wv"][l]).reshape(B, T, n_heads, d_k).transpose(0, 2, 1, 3)
        s = jnp.einsum("bhqd,bhkd->bhqk", q, k_) / np.sqrt(d_k)
        s = jnp.where(mask[:, None, None, :], -1e30, s)
        p = jax.nn.softmax(s, axis=-1)
        o = jnp.einsum("bhqk,bhkd->bhqd", p, v)
        o = o.transpose(0, 2, 1, 3).reshape(B, T, D)
        o = o @ params["wo"][l]
        z = o + res
        mu = z.mean(-1, keepdims=True)
        var = ((z - mu) ** 2).mean(-1, keepdims=True)
        zn = (z - mu) / jnp.sqrt(var + 1e-5)
        x = res + zn * params["ln_g"][l] + params["ln_b"][l]
    out = x @ params["fc2_w"]
    return out.mean(axis=1, keepdims=True)


if __name__ == "__main__":
    # Small config consistent with the module's __init__:
    B, T, n_mel = 2, 16, 16
    d_model, n_spectral, n_temporal, n_attn, n_heads, ksize = 32, 2, 2, 1, 2, 5

    key = jax.random.PRNGKey(0)
    k_mel, k_par = jax.random.split(key)
    mel = jax.random.normal(k_mel, (B, T, n_mel), jnp.float32)
    lengths = jnp.array([T, 12], dtype=jnp.int32)
    mask = jnp.arange(T)[None, :] >= lengths[:, None]        # True = padded

    params = init_params(k_par, n_mel, d_model, n_spectral, n_temporal,
                         n_attn, ksize)

    out = mel_content_encoder(mel, mask, params, n_heads)
    out = jax.block_until_ready(out)

    ref = reference(mel, mask, params, n_heads)
    assert out.shape == (B, 1, d_model)
    max_err = float(jnp.max(jnp.abs(out - ref)))
    if max_err > 5e-2:
        raise AssertionError(f"mismatch vs reference: max abs err {max_err}")
    print("KERNEL_OK")
</pallas_src>

<mosaic_0001>
module attributes {stable_mosaic.version = 11 : i64} {
  func.func @kernel(%arg0: i32, %arg1: memref<1x16x16xf32, #tpu.memory_space<vmem>>, %arg2: memref<1x1x16xf32, #tpu.memory_space<vmem>>, %arg3: memref<16x32xbf16, #tpu.memory_space<vmem>>, %arg4: memref<2x32x32xbf16, #tpu.memory_space<vmem>>, %arg5: memref<2x160x64xbf16, #tpu.memory_space<vmem>>, %arg6: memref<2x1x64xf32, #tpu.memory_space<vmem>>, %arg7: memref<1x32x32xbf16, #tpu.memory_space<vmem>>, %arg8: memref<1x32x32xbf16, #tpu.memory_space<vmem>>, %arg9: memref<1x32x32xbf16, #tpu.memory_space<vmem>>, %arg10: memref<1x32x32xbf16, #tpu.memory_space<vmem>>, %arg11: memref<1x1x32xf32, #tpu.memory_space<vmem>>, %arg12: memref<1x1x32xf32, #tpu.memory_space<vmem>>, %arg13: memref<32x32xbf16, #tpu.memory_space<vmem>>, %arg14: memref<1x1x32xf32, #tpu.memory_space<vmem>>) attributes {dimension_semantics = [#tpu.dimension_semantics<parallel>], iteration_bounds = array<i64: 2>, scalar_prefetch = 0 : i64, scratch_operands = 0 : i64, tpu.core_type = #tpu.core_type<tc>, window_params = [{transform_indices = @transform_0, window_bounds = array<i64: 1, 16, 16>}, {transform_indices = @transform_1, window_bounds = array<i64: 1, 1, 16>}, {pipeline_mode = #tpu.pipeline_mode<synchronous>, transform_indices = @transform_2, window_bounds = array<i64: 16, 32>}, {pipeline_mode = #tpu.pipeline_mode<synchronous>, transform_indices = @transform_3, window_bounds = array<i64: 2, 32, 32>}, {pipeline_mode = #tpu.pipeline_mode<synchronous>, transform_indices = @transform_4, window_bounds = array<i64: 2, 160, 64>}, {pipeline_mode = #tpu.pipeline_mode<synchronous>, transform_indices = @transform_5, window_bounds = array<i64: 2, 1, 64>}, {pipeline_mode = #tpu.pipeline_mode<synchronous>, transform_indices = @transform_6, window_bounds = array<i64: 1, 32, 32>}, {pipeline_mode = #tpu.pipeline_mode<synchronous>, transform_indices = @transform_7, window_bounds = array<i64: 1, 32, 32>}, {pipeline_mode = #tpu.pipeline_mode<synchronous>, transform_indices = @transform_8, window_bounds = array<i64: 1, 32, 32>}, {pipeline_mode = #tpu.pipeline_mode<synchronous>, transform_indices = @transform_9, window_bounds = array<i64: 1, 32, 32>}, {pipeline_mode = #tpu.pipeline_mode<synchronous>, transform_indices = @transform_10, window_bounds = array<i64: 1, 1, 32>}, {pipeline_mode = #tpu.pipeline_mode<synchronous>, transform_indices = @transform_11, window_bounds = array<i64: 1, 1, 32>}, {pipeline_mode = #tpu.pipeline_mode<synchronous>, transform_indices = @transform_12, window_bounds = array<i64: 32, 32>}, {transform_indices = @transform_13, window_bounds = array<i64: 1, 1, 32>}]} {
    %c0 = arith.constant 0 : index
    %c0_0 = arith.constant 0 : index
    %c0_1 = arith.constant 0 : index
    %0 = vector.load %arg1[%c0, %c0_0, %c0_1] : memref<1x16x16xf32, #tpu.memory_space<vmem>>, vector<1x16x16xf32>
    %1 = vector.shape_cast %0 : vector<1x16x16xf32> to vector<16x16xf32>
    %c0_2 = arith.constant 0 : index
    %c0_3 = arith.constant 0 : index
    %c0_4 = arith.constant 0 : index
    %2 = vector.load %arg2[%c0_2, %c0_3, %c0_4] : memref<1x1x16xf32, #tpu.memory_space<vmem>>, vector<1x1x16xf32>
    %3 = vector.shape_cast %2 : vector<1x1x16xf32> to vector<1x16xf32>
    %cst = arith.constant -1.000000e+30 : f32
    %4 = vector.broadcast %cst : f32 to vector<1x16xf32>
    %5 = arith.mulf %3, %4 : vector<1x16xf32>
    %6 = arith.truncf %1 : vector<16x16xf32> to vector<16x16xbf16>
    %c0_5 = arith.constant 0 : index
    %c0_6 = arith.constant 0 : index
    %7 = vector.load %arg3[%c0_5, %c0_6] : memref<16x32xbf16, #tpu.memory_space<vmem>>, vector<16x32xbf16>
    %cst_7 = arith.constant dense<0.000000e+00> : vector<16x32xf32>
    %8 = tpu.matmul %6, %7, %cst_7 {dimension_numbers = #tpu.dot_dimension_numbers<[1], [0], [0], [1], [0, 0, 1, 1], [], []>} : vector<16x16xbf16>, vector<16x32xbf16>, vector<16x32xf32> -> vector<16x32xf32>
    %9 = arith.truncf %8 : vector<16x32xf32> to vector<16x32xbf16>
    %c0_8 = arith.constant 0 : index
    %c0_9 = arith.constant 0 : index
    %c0_10 = arith.constant 0 : index
    %10 = vector.load %arg4[%c0_8, %c0_9, %c0_10] : memref<2x32x32xbf16, #tpu.memory_space<vmem>>, vector<1x32x32xbf16>
    %11 = vector.shape_cast %10 : vector<1x32x32xbf16> to vector<32x32xbf16>
    %cst_11 = arith.constant dense<0.000000e+00> : vector<16x32xf32>
    %12 = tpu.matmul %9, %11, %cst_11 {dimension_numbers = #tpu.dot_dimension_numbers<[1], [0], [0], [1], [0, 0, 1, 1], [], []>} : vector<16x32xbf16>, vector<32x32xbf16>, vector<16x32xf32> -> vector<16x32xf32>
    %13 = math.absf %12 : vector<16x32xf32>
    %cst_12 = arith.constant 0.000000e+00 : f32
    %14 = vector.broadcast %cst_12 : f32 to vector<16x32xf32>
    %15 = arith.subf %14, %13 : vector<16x32xf32>
    %16 = math.exp %15 : vector<16x32xf32>
    %cst_13 = arith.constant 0.000000e+00 : f32
    %17 = vector.broadcast %cst_13 : f32 to vector<16x32xf32>
    %18 = arith.cmpf oge, %12, %17 : vector<16x32xf32>
    %cst_14 = arith.constant 2.000000e+00 : f32
    %19 = vector.broadcast %cst_14 : f32 to vector<16x32xf32>
    %20 = arith.mulf %19, %16 : vector<16x32xf32>
    %cst_15 = arith.constant 1.000000e+00 : f32
    %21 = vector.broadcast %cst_15 : f32 to vector<16x32xf32>
    %22 = arith.addf %21, %20 : vector<16x32xf32>
    %cst_16 = arith.constant 2.000000e+00 : f32
    %23 = vector.broadcast %cst_16 : f32 to vector<16x32xf32>
    %24 = arith.addf %23, %16 : vector<16x32xf32>
    %25 = arith.mulf %16, %24 : vector<16x32xf32>
    %26 = arith.select %18, %22, %25 : vector<16x32xi1>, vector<16x32xf32>
    %cst_17 = arith.constant 2.000000e+00 : f32
    %27 = vector.broadcast %cst_17 : f32 to vector<16x32xf32>
    %28 = arith.mulf %27, %16 : vector<16x32xf32>
    %cst_18 = arith.constant 1.000000e+00 : f32
    %29 = vector.broadcast %cst_18 : f32 to vector<16x32xf32>
    %30 = arith.addf %29, %28 : vector<16x32xf32>
    %cst_19 = arith.constant 2.000000e+00 : f32
    %31 = vector.broadcast %cst_19 : f32 to vector<16x32xf32>
    %32 = arith.mulf %31, %16 : vector<16x32xf32>
    %33 = arith.mulf %32, %16 : vector<16x32xf32>
    %34 = arith.addf %30, %33 : vector<16x32xf32>
    %cst_20 = arith.constant 2.000000e+00 : f32
    %35 = vector.broadcast %cst_20 : f32 to vector<16x32xf32>
    %36 = arith.addf %35, %16 : vector<16x32xf32>
    %37 = arith.mulf %16, %36 : vector<16x32xf32>
    %cst_21 = arith.constant 2.000000e+00 : f32
    %38 = vector.broadcast %cst_21 : f32 to vector<16x32xf32>
    %39 = arith.addf %38, %37 : vector<16x32xf32>
    %40 = arith.select %18, %34, %39 : vector<16x32xi1>, vector<16x32xf32>
    %41 = arith.mulf %12, %26 : vector<16x32xf32>
    %42 = tpu.reciprocal %40 {approx = true} : vector<16x32xf32> -> vector<16x32xf32>
    %43 = arith.mulf %41, %42 : vector<16x32xf32>
    %44 = arith.truncf %43 : vector<16x32xf32> to vector<16x32xbf16>
    %c1 = arith.constant 1 : index
    %c0_22 = arith.constant 0 : index
    %c0_23 = arith.constant 0 : index
    %45 = vector.load %arg4[%c1, %c0_22, %c0_23] : memref<2x32x32xbf16, #tpu.memory_space<vmem>>, vector<1x32x32xbf16>
    %46 = vector.shape_cast %45 : vector<1x32x32xbf16> to vector<32x32xbf16>
    %cst_24 = arith.constant dense<0.000000e+00> : vector<16x32xf32>
    %47 = tpu.matmul %44, %46, %cst_24 {dimension_numbers = #tpu.dot_dimension_numbers<[1], [0], [0], [1], [0, 0, 1, 1], [], []>} : vector<16x32xbf16>, vector<32x32xbf16>, vector<16x32xf32> -> vector<16x32xf32>
    %48 = math.absf %47 : vector<16x32xf32>
    %cst_25 = arith.constant 0.000000e+00 : f32
    %49 = vector.broadcast %cst_25 : f32 to vector<16x32xf32>
    %50 = arith.subf %49, %48 : vector<16x32xf32>
    %51 = math.exp %50 : vector<16x32xf32>
    %cst_26 = arith.constant 0.000000e+00 : f32
    %52 = vector.broadcast %cst_26 : f32 to vector<16x32xf32>
    %53 = arith.cmpf oge, %47, %52 : vector<16x32xf32>
    %cst_27 = arith.constant 2.000000e+00 : f32
    %54 = vector.broadcast %cst_27 : f32 to vector<16x32xf32>
    %55 = arith.mulf %54, %51 : vector<16x32xf32>
    %cst_28 = arith.constant 1.000000e+00 : f32
    %56 = vector.broadcast %cst_28 : f32 to vector<16x32xf32>
    %57 = arith.addf %56, %55 : vector<16x32xf32>
    %cst_29 = arith.constant 2.000000e+00 : f32
    %58 = vector.broadcast %cst_29 : f32 to vector<16x32xf32>
    %59 = arith.addf %58, %51 : vector<16x32xf32>
    %60 = arith.mulf %51, %59 : vector<16x32xf32>
    %61 = arith.select %53, %57, %60 : vector<16x32xi1>, vector<16x32xf32>
    %cst_30 = arith.constant 2.000000e+00 : f32
    %62 = vector.broadcast %cst_30 : f32 to vector<16x32xf32>
    %63 = arith.mulf %62, %51 : vector<16x32xf32>
    %cst_31 = arith.constant 1.000000e+00 : f32
    %64 = vector.broadcast %cst_31 : f32 to vector<16x32xf32>
    %65 = arith.addf %64, %63 : vector<16x32xf32>
    %cst_32 = arith.constant 2.000000e+00 : f32
    %66 = vector.broadcast %cst_32 : f32 to vector<16x32xf32>
    %67 = arith.mulf %66, %51 : vector<16x32xf32>
    %68 = arith.mulf %67, %51 : vector<16x32xf32>
    %69 = arith.addf %65, %68 : vector<16x32xf32>
    %cst_33 = arith.constant 2.000000e+00 : f32
    %70 = vector.broadcast %cst_33 : f32 to vector<16x32xf32>
    %71 = arith.addf %70, %51 : vector<16x32xf32>
    %72 = arith.mulf %51, %71 : vector<16x32xf32>
    %cst_34 = arith.constant 2.000000e+00 : f32
    %73 = vector.broadcast %cst_34 : f32 to vector<16x32xf32>
    %74 = arith.addf %73, %72 : vector<16x32xf32>
    %75 = arith.select %53, %69, %74 : vector<16x32xi1>, vector<16x32xf32>
    %76 = arith.mulf %47, %61 : vector<16x32xf32>
    %77 = tpu.reciprocal %75 {approx = true} : vector<16x32xf32> -> vector<16x32xf32>
    %78 = arith.mulf %76, %77 : vector<16x32xf32>
    %79 = arith.truncf %78 : vector<16x32xf32> to vector<16x32xbf16>
    %cst_35 = arith.constant 0.000000e+00 : bf16
    %80 = vector.broadcast %cst_35 : bf16 to vector<2x32xbf16>
    %81 = tpu.concatenate %80, %79, %80 in 0 : vector<2x32xbf16>, vector<16x32xbf16>, vector<2x32xbf16> -> vector<20x32xbf16>
    %82 = vector.extract_strided_slice %81 {offsets = [0, 0], sizes = [16, 32], strides = [1, 1]} : vector<20x32xbf16> to vector<16x32xbf16>
    %83 = vector.extract_strided_slice %81 {offsets = [1, 0], sizes = [16, 32], strides = [1, 1]} : vector<20x32xbf16> to vector<16x32xbf16>
    %84 = vector.extract_strided_slice %81 {offsets = [2, 0], sizes = [16, 32], strides = [1, 1]} : vector<20x32xbf16> to vector<16x32xbf16>
    %85 = vector.extract_strided_slice %81 {offsets = [3, 0], sizes = [16, 32], strides = [1, 1]} : vector<20x32xbf16> to vector<16x32xbf16>
    %86 = vector.extract_strided_slice %81 {offsets = [4, 0], sizes = [16, 32], strides = [1, 1]} : vector<20x32xbf16> to vector<16x32xbf16>
    %87 = tpu.concatenate %82, %83, %84, %85, %86 in 1 : vector<16x32xbf16>, vector<16x32xbf16>, vector<16x32xbf16>, vector<16x32xbf16>, vector<16x32xbf16> -> vector<16x160xbf16>
    %c0_36 = arith.constant 0 : index
    %c0_37 = arith.constant 0 : index
    %c0_38 = arith.constant 0 : index
    %88 = vector.load %arg5[%c0_36, %c0_37, %c0_38] : memref<2x160x64xbf16, #tpu.memory_space<vmem>>, vector<1x160x64xbf16>
    %89 = vector.shape_cast %88 : vector<1x160x64xbf16> to vector<160x64xbf16>
    %cst_39 = arith.constant dense<0.000000e+00> : vector<16x64xf32>
    %90 = tpu.matmul %87, %89, %cst_39 {dimension_numbers = #tpu.dot_dimension_numbers<[1], [0], [0], [1], [0, 0, 1, 1], [], []>} : vector<16x160xbf16>, vector<160x64xbf16>, vector<16x64xf32> -> vector<16x64xf32>
    %c0_40 = arith.constant 0 : index
    %c0_41 = arith.constant 0 : index
    %c0_42 = arith.constant 0 : index
    %91 = vector.load %arg6[%c0_40, %c0_41, %c0_42] : memref<2x1x64xf32, #tpu.memory_space<vmem>>, vector<1x1x64xf32>
    %92 = vector.shape_cast %91 : vector<1x1x64xf32> to vector<1x64xf32>
    %93 = vector.broadcast %92 : vector<1x64xf32> to vector<16x64xf32>
    %94 = arith.addf %90, %93 : vector<16x64xf32>
    %95 = math.absf %94 : vector<16x64xf32>
    %cst_43 = arith.constant 0.000000e+00 : f32
    %96 = vector.broadcast %cst_43 : f32 to vector<16x64xf32>
    %97 = arith.subf %96, %95 : vector<16x64xf32>
    %98 = math.exp %97 : vector<16x64xf32>
    %cst_44 = arith.constant 0.000000e+00 : f32
    %99 = vector.broadcast %cst_44 : f32 to vector<16x64xf32>
    %100 = arith.cmpf oge, %94, %99 : vector<16x64xf32>
    %cst_45 = arith.constant 2.000000e+00 : f32
    %101 = vector.broadcast %cst_45 : f32 to vector<16x64xf32>
    %102 = arith.mulf %101, %98 : vector<16x64xf32>
    %cst_46 = arith.constant 1.000000e+00 : f32
    %103 = vector.broadcast %cst_46 : f32 to vector<16x64xf32>
    %104 = arith.addf %103, %102 : vector<16x64xf32>
    %cst_47 = arith.constant 2.000000e+00 : f32
    %105 = vector.broadcast %cst_47 : f32 to vector<16x64xf32>
    %106 = arith.addf %105, %98 : vector<16x64xf32>
    %107 = arith.mulf %98, %106 : vector<16x64xf32>
    %108 = arith.select %100, %104, %107 : vector<16x64xi1>, vector<16x64xf32>
    %cst_48 = arith.constant 2.000000e+00 : f32
    %109 = vector.broadcast %cst_48 : f32 to vector<16x64xf32>
    %110 = arith.mulf %109, %98 : vector<16x64xf32>
    %cst_49 = arith.constant 1.000000e+00 : f32
    %111 = vector.broadcast %cst_49 : f32 to vector<16x64xf32>
    %112 = arith.addf %111, %110 : vector<16x64xf32>
    %cst_50 = arith.constant 2.000000e+00 : f32
    %113 = vector.broadcast %cst_50 : f32 to vector<16x64xf32>
    %114 = arith.mulf %113, %98 : vector<16x64xf32>
    %115 = arith.mulf %114, %98 : vector<16x64xf32>
    %116 = arith.addf %112, %115 : vector<16x64xf32>
    %cst_51 = arith.constant 2.000000e+00 : f32
    %117 = vector.broadcast %cst_51 : f32 to vector<16x64xf32>
    %118 = arith.addf %117, %98 : vector<16x64xf32>
    %119 = arith.mulf %98, %118 : vector<16x64xf32>
    %cst_52 = arith.constant 2.000000e+00 : f32
    %120 = vector.broadcast %cst_52 : f32 to vector<16x64xf32>
    %121 = arith.addf %120, %119 : vector<16x64xf32>
    %122 = arith.select %100, %116, %121 : vector<16x64xi1>, vector<16x64xf32>
    %123 = arith.mulf %94, %108 : vector<16x64xf32>
    %124 = tpu.reciprocal %122 {approx = true} : vector<16x64xf32> -> vector<16x64xf32>
    %125 = arith.mulf %123, %124 : vector<16x64xf32>
    %126 = vector.extract_strided_slice %125 {offsets = [0, 0], sizes = [16, 32], strides = [1, 1]} : vector<16x64xf32> to vector<16x32xf32>
    %127 = vector.extract_strided_slice %125 {offsets = [0, 32], sizes = [16, 32], strides = [1, 1]} : vector<16x64xf32> to vector<16x32xf32>
    %128 = math.absf %127 : vector<16x32xf32>
    %cst_53 = arith.constant 0.000000e+00 : f32
    %129 = vector.broadcast %cst_53 : f32 to vector<16x32xf32>
    %130 = arith.subf %129, %128 : vector<16x32xf32>
    %131 = math.exp %130 : vector<16x32xf32>
    %cst_54 = arith.constant 0.000000e+00 : f32
    %132 = vector.broadcast %cst_54 : f32 to vector<16x32xf32>
    %133 = arith.cmpf oge, %127, %132 : vector<16x32xf32>
    %cst_55 = arith.constant 1.000000e+00 : f32
    %134 = vector.broadcast %cst_55 : f32 to vector<16x32xf32>
    %135 = arith.select %133, %134, %131 : vector<16x32xi1>, vector<16x32xf32>
    %cst_56 = arith.constant 1.000000e+00 : f32
    %136 = vector.broadcast %cst_56 : f32 to vector<16x32xf32>
    %137 = arith.addf %136, %131 : vector<16x32xf32>
    %138 = tpu.reciprocal %137 {approx = true} : vector<16x32xf32> -> vector<16x32xf32>
    %139 = arith.mulf %135, %138 : vector<16x32xf32>
    %140 = arith.mulf %126, %139 : vector<16x32xf32>
    %141 = arith.addf %78, %140 : vector<16x32xf32>
    %142 = arith.truncf %141 : vector<16x32xf32> to vector<16x32xbf16>
    %cst_57 = arith.constant 0.000000e+00 : bf16
    %143 = vector.broadcast %cst_57 : bf16 to vector<2x32xbf16>
    %144 = tpu.concatenate %143, %142, %143 in 0 : vector<2x32xbf16>, vector<16x32xbf16>, vector<2x32xbf16> -> vector<20x32xbf16>
    %145 = vector.extract_strided_slice %144 {offsets = [0, 0], sizes = [16, 32], strides = [1, 1]} : vector<20x32xbf16> to vector<16x32xbf16>
    %146 = vector.extract_strided_slice %144 {offsets = [1, 0], sizes = [16, 32], strides = [1, 1]} : vector<20x32xbf16> to vector<16x32xbf16>
    %147 = vector.extract_strided_slice %144 {offsets = [2, 0], sizes = [16, 32], strides = [1, 1]} : vector<20x32xbf16> to vector<16x32xbf16>
    %148 = vector.extract_strided_slice %144 {offsets = [3, 0], sizes = [16, 32], strides = [1, 1]} : vector<20x32xbf16> to vector<16x32xbf16>
    %149 = vector.extract_strided_slice %144 {offsets = [4, 0], sizes = [16, 32], strides = [1, 1]} : vector<20x32xbf16> to vector<16x32xbf16>
    %150 = tpu.concatenate %145, %146, %147, %148, %149 in 1 : vector<16x32xbf16>, vector<16x32xbf16>, vector<16x32xbf16>, vector<16x32xbf16>, vector<16x32xbf16> -> vector<16x160xbf16>
    %c1_58 = arith.constant 1 : index
    %c0_59 = arith.constant 0 : index
    %c0_60 = arith.constant 0 : index
    %151 = vector.load %arg5[%c1_58, %c0_59, %c0_60] : memref<2x160x64xbf16, #tpu.memory_space<vmem>>, vector<1x160x64xbf16>
    %152 = vector.shape_cast %151 : vector<1x160x64xbf16> to vector<160x64xbf16>
    %cst_61 = arith.constant dense<0.000000e+00> : vector<16x64xf32>
    %153 = tpu.matmul %150, %152, %cst_61 {dimension_numbers = #tpu.dot_dimension_numbers<[1], [0], [0], [1], [0, 0, 1, 1], [], []>} : vector<16x160xbf16>, vector<160x64xbf16>, vector<16x64xf32> -> vector<16x64xf32>
    %c1_62 = arith.constant 1 : index
    %c0_63 = arith.constant 0 : index
    %c0_64 = arith.constant 0 : index
    %154 = vector.load %arg6[%c1_62, %c0_63, %c0_64] : memref<2x1x64xf32, #tpu.memory_space<vmem>>, vector<1x1x64xf32>
    %155 = vector.shape_cast %154 : vector<1x1x64xf32> to vector<1x64xf32>
    %156 = vector.broadcast %155 : vector<1x64xf32> to vector<16x64xf32>
    %157 = arith.addf %153, %156 : vector<16x64xf32>
    %158 = math.absf %157 : vector<16x64xf32>
    %cst_65 = arith.constant 0.000000e+00 : f32
    %159 = vector.broadcast %cst_65 : f32 to vector<16x64xf32>
    %160 = arith.subf %159, %158 : vector<16x64xf32>
    %161 = math.exp %160 : vector<16x64xf32>
    %cst_66 = arith.constant 0.000000e+00 : f32
    %162 = vector.broadcast %cst_66 : f32 to vector<16x64xf32>
    %163 = arith.cmpf oge, %157, %162 : vector<16x64xf32>
    %cst_67 = arith.constant 2.000000e+00 : f32
    %164 = vector.broadcast %cst_67 : f32 to vector<16x64xf32>
    %165 = arith.mulf %164, %161 : vector<16x64xf32>
    %cst_68 = arith.constant 1.000000e+00 : f32
    %166 = vector.broadcast %cst_68 : f32 to vector<16x64xf32>
    %167 = arith.addf %166, %165 : vector<16x64xf32>
    %cst_69 = arith.constant 2.000000e+00 : f32
    %168 = vector.broadcast %cst_69 : f32 to vector<16x64xf32>
    %169 = arith.addf %168, %161 : vector<16x64xf32>
    %170 = arith.mulf %161, %169 : vector<16x64xf32>
    %171 = arith.select %163, %167, %170 : vector<16x64xi1>, vector<16x64xf32>
    %cst_70 = arith.constant 2.000000e+00 : f32
    %172 = vector.broadcast %cst_70 : f32 to vector<16x64xf32>
    %173 = arith.mulf %172, %161 : vector<16x64xf32>
    %cst_71 = arith.constant 1.000000e+00 : f32
    %174 = vector.broadcast %cst_71 : f32 to vector<16x64xf32>
    %175 = arith.addf %174, %173 : vector<16x64xf32>
    %cst_72 = arith.constant 2.000000e+00 : f32
    %176 = vector.broadcast %cst_72 : f32 to vector<16x64xf32>
    %177 = arith.mulf %176, %161 : vector<16x64xf32>
    %178 = arith.mulf %177, %161 : vector<16x64xf32>
    %179 = arith.addf %175, %178 : vector<16x64xf32>
    %cst_73 = arith.constant 2.000000e+00 : f32
    %180 = vector.broadcast %cst_73 : f32 to vector<16x64xf32>
    %181 = arith.addf %180, %161 : vector<16x64xf32>
    %182 = arith.mulf %161, %181 : vector<16x64xf32>
    %cst_74 = arith.constant 2.000000e+00 : f32
    %183 = vector.broadcast %cst_74 : f32 to vector<16x64xf32>
    %184 = arith.addf %183, %182 : vector<16x64xf32>
    %185 = arith.select %163, %179, %184 : vector<16x64xi1>, vector<16x64xf32>
    %186 = arith.mulf %157, %171 : vector<16x64xf32>
    %187 = tpu.reciprocal %185 {approx = true} : vector<16x64xf32> -> vector<16x64xf32>
    %188 = arith.mulf %186, %187 : vector<16x64xf32>
    %189 = vector.extract_strided_slice %188 {offsets = [0, 0], sizes = [16, 32], strides = [1, 1]} : vector<16x64xf32> to vector<16x32xf32>
    %190 = vector.extract_strided_slice %188 {offsets = [0, 32], sizes = [16, 32], strides = [1, 1]} : vector<16x64xf32> to vector<16x32xf32>
    %191 = math.absf %190 : vector<16x32xf32>
    %cst_75 = arith.constant 0.000000e+00 : f32
    %192 = vector.broadcast %cst_75 : f32 to vector<16x32xf32>
    %193 = arith.subf %192, %191 : vector<16x32xf32>
    %194 = math.exp %193 : vector<16x32xf32>
    %cst_76 = arith.constant 0.000000e+00 : f32
    %195 = vector.broadcast %cst_76 : f32 to vector<16x32xf32>
    %196 = arith.cmpf oge, %190, %195 : vector<16x32xf32>
    %cst_77 = arith.constant 1.000000e+00 : f32
    %197 = vector.broadcast %cst_77 : f32 to vector<16x32xf32>
    %198 = arith.select %196, %197, %194 : vector<16x32xi1>, vector<16x32xf32>
    %cst_78 = arith.constant 1.000000e+00 : f32
    %199 = vector.broadcast %cst_78 : f32 to vector<16x32xf32>
    %200 = arith.addf %199, %194 : vector<16x32xf32>
    %201 = tpu.reciprocal %200 {approx = true} : vector<16x32xf32> -> vector<16x32xf32>
    %202 = arith.mulf %198, %201 : vector<16x32xf32>
    %203 = arith.mulf %189, %202 : vector<16x32xf32>
    %204 = arith.addf %141, %203 : vector<16x32xf32>
    %205 = arith.truncf %204 : vector<16x32xf32> to vector<16x32xbf16>
    %c0_79 = arith.constant 0 : index
    %c0_80 = arith.constant 0 : index
    %c0_81 = arith.constant 0 : index
    %206 = vector.load %arg7[%c0_79, %c0_80, %c0_81] : memref<1x32x32xbf16, #tpu.memory_space<vmem>>, vector<1x32x32xbf16>
    %207 = vector.shape_cast %206 : vector<1x32x32xbf16> to vector<32x32xbf16>
    %cst_82 = arith.constant dense<0.000000e+00> : vector<16x32xf32>
    %208 = tpu.matmul %205, %207, %cst_82 {dimension_numbers = #tpu.dot_dimension_numbers<[1], [0], [0], [1], [0, 0, 1, 1], [], []>} : vector<16x32xbf16>, vector<32x32xbf16>, vector<16x32xf32> -> vector<16x32xf32>
    %c0_83 = arith.constant 0 : index
    %c0_84 = arith.constant 0 : index
    %c0_85 = arith.constant 0 : index
    %209 = vector.load %arg8[%c0_83, %c0_84, %c0_85] : memref<1x32x32xbf16, #tpu.memory_space<vmem>>, vector<1x32x32xbf16>
    %210 = vector.shape_cast %209 : vector<1x32x32xbf16> to vector<32x32xbf16>
    %cst_86 = arith.constant dense<0.000000e+00> : vector<16x32xf32>
    %211 = tpu.matmul %205, %210, %cst_86 {dimension_numbers = #tpu.dot_dimension_numbers<[1], [0], [0], [1], [0, 0, 1, 1], [], []>} : vector<16x32xbf16>, vector<32x32xbf16>, vector<16x32xf32> -> vector<16x32xf32>
    %c0_87 = arith.constant 0 : index
    %c0_88 = arith.constant 0 : index
    %c0_89 = arith.constant 0 : index
    %212 = vector.load %arg9[%c0_87, %c0_88, %c0_89] : memref<1x32x32xbf16, #tpu.memory_space<vmem>>, vector<1x32x32xbf16>
    %213 = vector.shape_cast %212 : vector<1x32x32xbf16> to vector<32x32xbf16>
    %cst_90 = arith.constant dense<0.000000e+00> : vector<16x32xf32>
    %214 = tpu.matmul %205, %213, %cst_90 {dimension_numbers = #tpu.dot_dimension_numbers<[1], [0], [0], [1], [0, 0, 1, 1], [], []>} : vector<16x32xbf16>, vector<32x32xbf16>, vector<16x32xf32> -> vector<16x32xf32>
    %215 = arith.truncf %208 : vector<16x32xf32> to vector<16x32xbf16>
    %216 = arith.truncf %211 : vector<16x32xf32> to vector<16x32xbf16>
    %217 = arith.truncf %214 : vector<16x32xf32> to vector<16x32xbf16>
    %218 = vector.extract_strided_slice %215 {offsets = [0, 0], sizes = [16, 16], strides = [1, 1]} : vector<16x32xbf16> to vector<16x16xbf16>
    %219 = vector.extract_strided_slice %216 {offsets = [0, 0], sizes = [16, 16], strides = [1, 1]} : vector<16x32xbf16> to vector<16x16xbf16>
    %cst_91 = arith.constant dense<0.000000e+00> : vector<16x16xf32>
    %220 = tpu.matmul %218, %219, %cst_91 {dimension_numbers = #tpu.dot_dimension_numbers<[1], [1], [0], [0], [0, 0, 1, 0], [], []>} : vector<16x16xbf16>, vector<16x16xbf16>, vector<16x16xf32> -> vector<16x16xf32>
    %cst_92 = arith.constant 2.500000e-01 : f32
    %221 = vector.broadcast %cst_92 : f32 to vector<16x16xf32>
    %222 = arith.mulf %220, %221 : vector<16x16xf32>
    %223 = vector.broadcast %5 : vector<1x16xf32> to vector<16x16xf32>
    %224 = arith.addf %222, %223 : vector<16x16xf32>
    %cst_93 = arith.constant dense<0xFF800000> : vector<16xf32>
    %225 = vector.multi_reduction <maximumf>, %224, %cst_93 [1] : vector<16x16xf32> to vector<16xf32>
    %226 = vector.shape_cast %225 : vector<16xf32> to vector<16x1xf32>
    %227 = vector.broadcast %226 : vector<16x1xf32> to vector<16x16xf32>
    %228 = arith.subf %224, %227 : vector<16x16xf32>
    %229 = math.exp %228 : vector<16x16xf32>
    %cst_94 = arith.constant dense<0.000000e+00> : vector<16xf32>
    %230 = vector.multi_reduction <add>, %229, %cst_94 [1] : vector<16x16xf32> to vector<16xf32>
    %231 = vector.shape_cast %230 : vector<16xf32> to vector<16x1xf32>
    %232 = tpu.reciprocal %231 {approx = true} : vector<16x1xf32> -> vector<16x1xf32>
    %233 = vector.broadcast %232 : vector<16x1xf32> to vector<16x16xf32>
    %234 = arith.mulf %229, %233 : vector<16x16xf32>
    %235 = arith.truncf %234 : vector<16x16xf32> to vector<16x16xbf16>
    %236 = vector.extract_strided_slice %217 {offsets = [0, 0], sizes = [16, 16], strides = [1, 1]} : vector<16x32xbf16> to vector<16x16xbf16>
    %cst_95 = arith.constant dense<0.000000e+00> : vector<16x16xf32>
    %237 = tpu.matmul %235, %236, %cst_95 {dimension_numbers = #tpu.dot_dimension_numbers<[1], [0], [0], [1], [0, 0, 1, 1], [], []>} : vector<16x16xbf16>, vector<16x16xbf16>, vector<16x16xf32> -> vector<16x16xf32>
    %238 = vector.extract_strided_slice %215 {offsets = [0, 16], sizes = [16, 16], strides = [1, 1]} : vector<16x32xbf16> to vector<16x16xbf16>
    %239 = vector.extract_strided_slice %216 {offsets = [0, 16], sizes = [16, 16], strides = [1, 1]} : vector<16x32xbf16> to vector<16x16xbf16>
    %cst_96 = arith.constant dense<0.000000e+00> : vector<16x16xf32>
    %240 = tpu.matmul %238, %239, %cst_96 {dimension_numbers = #tpu.dot_dimension_numbers<[1], [1], [0], [0], [0, 0, 1, 0], [], []>} : vector<16x16xbf16>, vector<16x16xbf16>, vector<16x16xf32> -> vector<16x16xf32>
    %cst_97 = arith.constant 2.500000e-01 : f32
    %241 = vector.broadcast %cst_97 : f32 to vector<16x16xf32>
    %242 = arith.mulf %240, %241 : vector<16x16xf32>
    %243 = vector.broadcast %5 : vector<1x16xf32> to vector<16x16xf32>
    %244 = arith.addf %242, %243 : vector<16x16xf32>
    %cst_98 = arith.constant dense<0xFF800000> : vector<16xf32>
    %245 = vector.multi_reduction <maximumf>, %244, %cst_98 [1] : vector<16x16xf32> to vector<16xf32>
    %246 = vector.shape_cast %245 : vector<16xf32> to vector<16x1xf32>
    %247 = vector.broadcast %246 : vector<16x1xf32> to vector<16x16xf32>
    %248 = arith.subf %244, %247 : vector<16x16xf32>
    %249 = math.exp %248 : vector<16x16xf32>
    %cst_99 = arith.constant dense<0.000000e+00> : vector<16xf32>
    %250 = vector.multi_reduction <add>, %249, %cst_99 [1] : vector<16x16xf32> to vector<16xf32>
    %251 = vector.shape_cast %250 : vector<16xf32> to vector<16x1xf32>
    %252 = tpu.reciprocal %251 {approx = true} : vector<16x1xf32> -> vector<16x1xf32>
    %253 = vector.broadcast %252 : vector<16x1xf32> to vector<16x16xf32>
    %254 = arith.mulf %249, %253 : vector<16x16xf32>
    %255 = arith.truncf %254 : vector<16x16xf32> to vector<16x16xbf16>
    %256 = vector.extract_strided_slice %217 {offsets = [0, 16], sizes = [16, 16], strides = [1, 1]} : vector<16x32xbf16> to vector<16x16xbf16>
    %cst_100 = arith.constant dense<0.000000e+00> : vector<16x16xf32>
    %257 = tpu.matmul %255, %256, %cst_100 {dimension_numbers = #tpu.dot_dimension_numbers<[1], [0], [0], [1], [0, 0, 1, 1], [], []>} : vector<16x16xbf16>, vector<16x16xbf16>, vector<16x16xf32> -> vector<16x16xf32>
    %258 = tpu.concatenate %237, %257 in 1 : vector<16x16xf32>, vector<16x16xf32> -> vector<16x32xf32>
    %259 = arith.truncf %258 : vector<16x32xf32> to vector<16x32xbf16>
    %c0_101 = arith.constant 0 : index
    %c0_102 = arith.constant 0 : index
    %c0_103 = arith.constant 0 : index
    %260 = vector.load %arg10[%c0_101, %c0_102, %c0_103] : memref<1x32x32xbf16, #tpu.memory_space<vmem>>, vector<1x32x32xbf16>
    %261 = vector.shape_cast %260 : vector<1x32x32xbf16> to vector<32x32xbf16>
    %cst_104 = arith.constant dense<0.000000e+00> : vector<16x32xf32>
    %262 = tpu.matmul %259, %261, %cst_104 {dimension_numbers = #tpu.dot_dimension_numbers<[1], [0], [0], [1], [0, 0, 1, 1], [], []>} : vector<16x32xbf16>, vector<32x32xbf16>, vector<16x32xf32> -> vector<16x32xf32>
    %263 = arith.addf %262, %204 : vector<16x32xf32>
    %cst_105 = arith.constant dense<0.000000e+00> : vector<16xf32>
    %264 = vector.multi_reduction <add>, %263, %cst_105 [1] : vector<16x32xf32> to vector<16xf32>
    %265 = vector.shape_cast %264 : vector<16xf32> to vector<16x1xf32>
    %cst_106 = arith.constant 3.200000e+01 : f32
    %266 = vector.broadcast %cst_106 : f32 to vector<16x1xf32>
    %267 = arith.divf %265, %266 : vector<16x1xf32>
    %268 = vector.broadcast %267 : vector<16x1xf32> to vector<16x32xf32>
    %269 = arith.subf %263, %268 : vector<16x32xf32>
    %270 = arith.mulf %269, %269 : vector<16x32xf32>
    %cst_107 = arith.constant dense<0.000000e+00> : vector<16xf32>
    %271 = vector.multi_reduction <add>, %270, %cst_107 [1] : vector<16x32xf32> to vector<16xf32>
    %272 = vector.shape_cast %271 : vector<16xf32> to vector<16x1xf32>
    %cst_108 = arith.constant 3.200000e+01 : f32
    %273 = vector.broadcast %cst_108 : f32 to vector<16x1xf32>
    %274 = arith.divf %272, %273 : vector<16x1xf32>
    %275 = vector.broadcast %267 : vector<16x1xf32> to vector<16x32xf32>
    %276 = arith.subf %263, %275 : vector<16x32xf32>
    %cst_109 = arith.constant 9.99999974E-6 : f32
    %277 = vector.broadcast %cst_109 : f32 to vector<16x1xf32>
    %278 = arith.addf %274, %277 : vector<16x1xf32>
    %279 = math.rsqrt %278 : vector<16x1xf32>
    %280 = vector.broadcast %279 : vector<16x1xf32> to vector<16x32xf32>
    %281 = arith.mulf %276, %280 : vector<16x32xf32>
    %c0_110 = arith.constant 0 : index
    %c0_111 = arith.constant 0 : index
    %c0_112 = arith.constant 0 : index
    %282 = vector.load %arg11[%c0_110, %c0_111, %c0_112] : memref<1x1x32xf32, #tpu.memory_space<vmem>>, vector<1x1x32xf32>
    %283 = vector.shape_cast %282 : vector<1x1x32xf32> to vector<1x32xf32>
    %284 = vector.broadcast %283 : vector<1x32xf32> to vector<16x32xf32>
    %285 = arith.mulf %281, %284 : vector<16x32xf32>
    %286 = arith.addf %204, %285 : vector<16x32xf32>
    %c0_113 = arith.constant 0 : index
    %c0_114 = arith.constant 0 : index
    %c0_115 = arith.constant 0 : index
    %287 = vector.load %arg12[%c0_113, %c0_114, %c0_115] : memref<1x1x32xf32, #tpu.memory_space<vmem>>, vector<1x1x32xf32>
    %288 = vector.shape_cast %287 : vector<1x1x32xf32> to vector<1x32xf32>
    %289 = vector.broadcast %288 : vector<1x32xf32> to vector<16x32xf32>
    %290 = arith.addf %286, %289 : vector<16x32xf32>
    %cst_116 = arith.constant dense<0.000000e+00> : vector<32xf32>
    %291 = vector.multi_reduction <add>, %290, %cst_116 [0] : vector<16x32xf32> to vector<32xf32>
    %292 = vector.shape_cast %291 : vector<32xf32> to vector<1x32xf32>
    %cst_117 = arith.constant 1.600000e+01 : f32
    %293 = vector.broadcast %cst_117 : f32 to vector<1x32xf32>
    %294 = arith.divf %292, %293 : vector<1x32xf32>
    %295 = arith.truncf %294 : vector<1x32xf32> to vector<1x32xbf16>
    %c0_118 = arith.constant 0 : index
    %c0_119 = arith.constant 0 : index
    %296 = vector.load %arg13[%c0_118, %c0_119] : memref<32x32xbf16, #tpu.memory_space<vmem>>, vector<32x32xbf16>
    %cst_120 = arith.constant dense<0.000000e+00> : vector<1x32xf32>
    %297 = tpu.matmul %295, %296, %cst_120 {dimension_numbers = #tpu.dot_dimension_numbers<[1], [0], [0], [1], [0, 0, 1, 1], [], []>} : vector<1x32xbf16>, vector<32x32xbf16>, vector<1x32xf32> -> vector<1x32xf32>
    %c0_121 = arith.constant 0 : index
    %c0_122 = arith.constant 0 : index
    %c0_123 = arith.constant 0 : index
    %298 = vector.load %arg14[%c0_121, %c0_122, %c0_123] : memref<1x1x32xf32, #tpu.memory_space<vmem>>, vector<1x1x32xf32>
    %299 = vector.shape_cast %298 : vector<1x1x32xf32> to vector<1x32xf32>
    %300 = vector.shape_cast %297 : vector<1x32xf32> to vector<1x1x32xf32>
    tpu.vector_store %arg14[%c0_121, %c0_122, %c0_123], %300 {strides = array<i32>} : memref<1x1x32xf32, #tpu.memory_space<vmem>>, vector<1x1x32xf32>,
    return
  }
  func.func @transform_0(%arg0: i32) -> (i32, i32, i32) {
    %c0_i32 = arith.constant 0 : i32
    %c0_i32_0 = arith.constant 0 : i32
    %c0_i32_1 = arith.constant 0 : i32
    return %arg0, %c0_i32, %c0_i32_0 : i32, i32, i32
  }
  func.func @transform_1(%arg0: i32) -> (i32, i32, i32) {
    %c0_i32 = arith.constant 0 : i32
    %c0_i32_0 = arith.constant 0 : i32
    %c0_i32_1 = arith.constant 0 : i32
    return %arg0, %c0_i32, %c0_i32_0 : i32, i32, i32
  }
  func.func @transform_2(%arg0: i32) -> (i32, i32) {
    %c0_i32 = arith.constant 0 : i32
    %c0_i32_0 = arith.constant 0 : i32
    %c0_i32_1 = arith.constant 0 : i32
    return %c0_i32, %c0_i32_0 : i32, i32
  }
  func.func @transform_3(%arg0: i32) -> (i32, i32, i32) {
    %c0_i32 = arith.constant 0 : i32
    %c0_i32_0 = arith.constant 0 : i32
    %c0_i32_1 = arith.constant 0 : i32
    %c0_i32_2 = arith.constant 0 : i32
    return %c0_i32, %c0_i32_0, %c0_i32_1 : i32, i32, i32
  }
  func.func @transform_4(%arg0: i32) -> (i32, i32, i32) {
    %c0_i32 = arith.constant 0 : i32
    %c0_i32_0 = arith.constant 0 : i32
    %c0_i32_1 = arith.constant 0 : i32
    %c0_i32_2 = arith.constant 0 : i32
    return %c0_i32, %c0_i32_0, %c0_i32_1 : i32, i32, i32
  }
  func.func @transform_5(%arg0: i32) -> (i32, i32, i32) {
    %c0_i32 = arith.constant 0 : i32
    %c0_i32_0 = arith.constant 0 : i32
    %c0_i32_1 = arith.constant 0 : i32
    %c0_i32_2 = arith.constant 0 : i32
    return %c0_i32, %c0_i32_0, %c0_i32_1 : i32, i32, i32
  }
  func.func @transform_6(%arg0: i32) -> (i32, i32, i32) {
    %c0_i32 = arith.constant 0 : i32
    %c0_i32_0 = arith.constant 0 : i32
    %c0_i32_1 = arith.constant 0 : i32
    %c0_i32_2 = arith.constant 0 : i32
    return %c0_i32, %c0_i32_0, %c0_i32_1 : i32, i32, i32
  }
  func.func @transform_7(%arg0: i32) -> (i32, i32, i32) {
    %c0_i32 = arith.constant 0 : i32
    %c0_i32_0 = arith.constant 0 : i32
    %c0_i32_1 = arith.constant 0 : i32
    %c0_i32_2 = arith.constant 0 : i32
    return %c0_i32, %c0_i32_0, %c0_i32_1 : i32, i32, i32
  }
  func.func @transform_8(%arg0: i32) -> (i32, i32, i32) {
    %c0_i32 = arith.constant 0 : i32
    %c0_i32_0 = arith.constant 0 : i32
    %c0_i32_1 = arith.constant 0 : i32
    %c0_i32_2 = arith.constant 0 : i32
    return %c0_i32, %c0_i32_0, %c0_i32_1 : i32, i32, i32
  }
  func.func @transform_9(%arg0: i32) -> (i32, i32, i32) {
    %c0_i32 = arith.constant 0 : i32
    %c0_i32_0 = arith.constant 0 : i32
    %c0_i32_1 = arith.constant 0 : i32
    %c0_i32_2 = arith.constant 0 : i32
    return %c0_i32, %c0_i32_0, %c0_i32_1 : i32, i32, i32
  }
  func.func @transform_10(%arg0: i32) -> (i32, i32, i32) {
    %c0_i32 = arith.constant 0 : i32
    %c0_i32_0 = arith.constant 0 : i32
    %c0_i32_1 = arith.constant 0 : i32
    %c0_i32_2 = arith.constant 0 : i32
    return %c0_i32, %c0_i32_0, %c0_i32_1 : i32, i32, i32
  }
  func.func @transform_11(%arg0: i32) -> (i32, i32, i32) {
    %c0_i32 = arith.constant 0 : i32
    %c0_i32_0 = arith.constant 0 : i32
    %c0_i32_1 = arith.constant 0 : i32
    %c0_i32_2 = arith.constant 0 : i32
    return %c0_i32, %c0_i32_0, %c0_i32_1 : i32, i32, i32
  }
  func.func @transform_12(%arg0: i32) -> (i32, i32) {
    %c0_i32 = arith.constant 0 : i32
    %c0_i32_0 = arith.constant 0 : i32
    %c0_i32_1 = arith.constant 0 : i32
    return %c0_i32, %c0_i32_0 : i32, i32
  }
  func.func @transform_13(%arg0: i32) -> (i32, i32, i32) {
    %c0_i32 = arith.constant 0 : i32
    %c0_i32_0 = arith.constant 0 : i32
    %c0_i32_1 = arith.constant 0 : i32
    return %arg0, %c0_i32, %c0_i32_0 : i32, i32, i32
  }
}

</mosaic_0001>

<llo_original>
// kernel: tpu_custom_call.1
$region0: #{tpu_custom_call.1}
  #allocation0 [shape = 'u32[]', space=smem, size = 0x4, offset = 0x4, fixed_abs, tag = 'smem constant byte address 0x4 - core index']
  #allocation1 [shape = 'u32[72,128]{1,0:T(1,128)}', space=vmem, size = 0x9000, scoped, tag = 'internal scratch']
  %s0 = inlined_call_operand.vmem [shape: f32[2,16,16], index: 0, kind: input, shape index: {}]
  %s1 = inlined_call_operand.vmem [shape: f32[2,1,16], index: 1, kind: input, shape index: {}]
  %s2 = inlined_call_operand.vmem [shape: bf16[16,32], index: 2, kind: input, shape index: {}]
  %s3 = inlined_call_operand.vmem [shape: bf16[2,32,32], index: 3, kind: input, shape index: {}]
  %s4 = inlined_call_operand.vmem [shape: bf16[2,160,64], index: 4, kind: input, shape index: {}]
  %s5 = inlined_call_operand.vmem [shape: f32[2,1,64], index: 5, kind: input, shape index: {}]
  %s6 = inlined_call_operand.vmem [shape: bf16[1,32,32], index: 6, kind: input, shape index: {}]
  %s7 = inlined_call_operand.vmem [shape: bf16[1,32,32], index: 7, kind: input, shape index: {}]
  %s8 = inlined_call_operand.vmem [shape: bf16[1,32,32], index: 8, kind: input, shape index: {}]
  %s9 = inlined_call_operand.vmem [shape: bf16[1,32,32], index: 9, kind: input, shape index: {}]
  %s10 = inlined_call_operand.vmem [shape: f32[1,1,32], index: 10, kind: input, shape index: {}]
  %s11 = inlined_call_operand.vmem [shape: f32[1,1,32], index: 11, kind: input, shape index: {}]
  %s12 = inlined_call_operand.vmem [shape: bf16[32,32], index: 12, kind: input, shape index: {}]
  %s13 = inlined_call_operand.hbm [shape: f32[2,1,32], index: 13, kind: output, shape index: {}]
  %s14 = sld [smem:[#allocation0]]
  $region85: #{tpu_custom_call.1} parent=0
    _
  %s16 = ssub.s32 1, %s14
  %s17 = scalar_select 0, %s16, %s14
  $region1: #{tpu_custom_call.1} parent=0
    #allocation2 [shape = 'u8[1024]{0}', space=vmem, size = 0x400, scoped, tag = 'output window, operand 0']
    #allocation3 [shape = 's32[2]{0}', space=sflag, size = 0x8, scoped, tag = 'scoped memory for tpu_custom_call.1']
    %18 = vsyncpa [#allocation3], 0
    %s19 = scalar_lea.sflag [#allocation3], 1
    %20 = vsyncpa %s19, 0
    loop: start=0, step=1, limit=4
    $region2: #{tpu_custom_call.1} parent=1 // loop_pre_header
      _
    $region3: #{tpu_custom_call.1} parent=1 // loop_header
      %s22 = sphi 0, %s26
      %p23 = scmp.ge.s32.totalorder %s22, 4
      %s32 = sphi 0, %s34
      %s35 = sphi 0, %s32
      %s36 = sphi 0, %s35
      %s52 = sphi 0, %s36
      %s58 = sphi 0, %s60
      %s61 = sphi 0, %s58
      %s62 = sphi 0, %s61
      %s78 = sphi 0, %s62
      %s82 = sphi 0, %s82
      %s84 = sphi 0, %s82
      %s85 = sphi 0, %s84
      %s99 = sphi 0, %s85
      %s103 = sphi 0, %s103
      %s105 = sphi 0, %s103
      %s106 = sphi 0, %s105
      %s120 = sphi 0, %s106
      %s124 = sphi 0, %s124
      %s126 = sphi 0, %s124
      %s127 = sphi 0, %s126
      %s141 = sphi 0, %s127
      %s145 = sphi 0, %s145
      %s147 = sphi 0, %s145
      %s148 = sphi 0, %s147
      %s162 = sphi 0, %s148
      %s166 = sphi 0, %s166
      %s168 = sphi 0, %s166
      %s169 = sphi 0, %s168
      %s183 = sphi 0, %s169
      %s187 = sphi 0, %s187
      %s189 = sphi 0, %s187
      %s190 = sphi 0, %s189
      %s204 = sphi 0, %s190
      %s208 = sphi 0, %s208
      %s210 = sphi 0, %s208
      %s211 = sphi 0, %s210
      %s225 = sphi 0, %s211
      %s229 = sphi 0, %s229
      %s231 = sphi 0, %s229
      %s232 = sphi 0, %s231
      %s246 = sphi 0, %s232
      %s250 = sphi 0, %s250
      %s252 = sphi 0, %s250
      %s253 = sphi 0, %s252
      %s267 = sphi 0, %s253
      %s271 = sphi 0, %s271
      %s273 = sphi 0, %s271
      %s274 = sphi 0, %s273
      %s288 = sphi 0, %s274
      %s292 = sphi 0, %s292
      %s294 = sphi 0, %s292
      %s295 = sphi 0, %s294
      %s309 = sphi 0, %s295
      %s315 = sphi 0, %s317
      %s318 = sphi 0, %s315
      %s319 = sphi 0, %s318
      %s335 = sphi 0, %s319
    $region4: #{tpu_custom_call.1} parent=1 // loop_header_branch
      %25 = sbr.rel (%p23) target = $region8
    $region5: #{tpu_custom_call.1} parent=1 // loop_body
      %s27 = ssub.s32 %s22, 1
      %s28 = ssub.s32 %s22, 2
      %s29 = sadd.s32 %s22, 1
      %s30 = ssub.s32 %s22, %s29
      %p31 = scmp.eq.s32.totalorder %s30, 0
      %s33 = sadd.s32 %s32, 1
      %s34 = scalar_select %p31, %s32, %s33
      %p37 = pneg %p31
      %p38 = scmp.eq.s32.totalorder %s22, 1
      %p39 = por %p37, %p38
      %p40 = scmp.ne.s32.totalorder %s32, %s35
      %p41 = scmp.eq.s32.totalorder %s22, 0
      %p42 = por %p40, %p41
      %p43 = scmp.ne.s32.totalorder %s32, %s35
      %p44 = scmp.eq.s32.totalorder %s27, 1
      %p45 = por %p43, %p44
      %p46 = scmp.ne.s32.totalorder %s35, %s36
      %p47 = scmp.eq.s32.totalorder %s27, 0
      %p48 = por %p46, %p47
      %p49 = scmp.ne.s32.totalorder %s35, %s36
      %p50 = scmp.eq.s32.totalorder %s28, 1
      %p51 = por %p49, %p50
      %p53 = scmp.ne.s32.totalorder %s36, %s52
      %p54 = scmp.eq.s32.totalorder %s28, 0
      %p55 = por %p53, %p54
      %s56 = ssub.s32 %s22, %s29
      %p57 = scmp.eq.s32.totalorder %s56, 0
      %s59 = sadd.s32 %s58, 1
      %s60 = scalar_select %p57, %s58, %s59
      %p63 = pneg %p57
      %p64 = scmp.eq.s32.totalorder %s22, 1
      %p65 = por %p63, %p64
      %p66 = scmp.ne.s32.totalorder %s58, %s61
      %p67 = scmp.eq.s32.totalorder %s22, 0
      %p68 = por %p66, %p67
      %p69 = scmp.ne.s32.totalorder %s58, %s61
      %p70 = scmp.eq.s32.totalorder %s27, 1
      %p71 = por %p69, %p70
      %p72 = scmp.ne.s32.totalorder %s61, %s62
      %p73 = scmp.eq.s32.totalorder %s27, 0
      %p74 = por %p72, %p73
      %p75 = scmp.ne.s32.totalorder %s61, %s62
      %p76 = scmp.eq.s32.totalorder %s28, 1
      %p77 = por %p75, %p76
      %p79 = scmp.ne.s32.totalorder %s62, %s78
      %p80 = scmp.eq.s32.totalorder %s28, 0
      %p81 = por %p79, %p80
      %s83 = sadd.s32 %s82, 1
      %p86 = scmp.eq.s32.totalorder %s22, 1
      %p87 = scmp.ne.s32.totalorder %s82, %s84
      %p88 = scmp.eq.s32.totalorder %s22, 0
      %p89 = por %p87, %p88
      %p90 = scmp.ne.s32.totalorder %s82, %s84
      %p91 = scmp.eq.s32.totalorder %s27, 1
      %p92 = por %p90, %p91
      %p93 = scmp.ne.s32.totalorder %s84, %s85
      %p94 = scmp.eq.s32.totalorder %s27, 0
      %p95 = por %p93, %p94
      %p96 = scmp.ne.s32.totalorder %s84, %s85
      %p97 = scmp.eq.s32.totalorder %s28, 1
      %p98 = por %p96, %p97
      %p100 = scmp.ne.s32.totalorder %s85, %s99
      %p101 = scmp.eq.s32.totalorder %s28, 0
      %p102 = por %p100, %p101
      %s104 = sadd.s32 %s103, 1
      %p107 = scmp.eq.s32.totalorder %s22, 1
      %p108 = scmp.ne.s32.totalorder %s103, %s105
      %p109 = scmp.eq.s32.totalorder %s22, 0
      %p110 = por %p108, %p109
      %p111 = scmp.ne.s32.totalorder %s103, %s105
      %p112 = scmp.eq.s32.totalorder %s27, 1
      %p113 = por %p111, %p112
      %p114 = scmp.ne.s32.totalorder %s105, %s106
      %p115 = scmp.eq.s32.totalorder %s27, 0
      %p116 = por %p114, %p115
      %p117 = scmp.ne.s32.totalorder %s105, %s106
      %p118 = scmp.eq.s32.totalorder %s28, 1
      %p119 = por %p117, %p118
      %p121 = scmp.ne.s32.totalorder %s106, %s120
      %p122 = scmp.eq.s32.totalorder %s28, 0
      %p123 = por %p121, %p122
      %s125 = sadd.s32 %s124, 1
      %p128 = scmp.eq.s32.totalorder %s22, 1
      %p129 = scmp.ne.s32.totalorder %s124, %s126
      %p130 = scmp.eq.s32.totalorder %s22, 0
      %p131 = por %p129, %p130
      %p132 = scmp.ne.s32.totalorder %s124, %s126
      %p133 = scmp.eq.s32.totalorder %s27, 1
      %p134 = por %p132, %p133
      %p135 = scmp.ne.s32.totalorder %s126, %s127
      %p136 = scmp.eq.s32.totalorder %s27, 0
      %p137 = por %p135, %p136
      %p138 = scmp.ne.s32.totalorder %s126, %s127
      %p139 = scmp.eq.s32.totalorder %s28, 1
      %p140 = por %p138, %p139
      %p142 = scmp.ne.s32.totalorder %s127, %s141
      %p143 = scmp.eq.s32.totalorder %s28, 0
      %p144 = por %p142, %p143
      %s146 = sadd.s32 %s145, 1
      %p149 = scmp.eq.s32.totalorder %s22, 1
      %p150 = scmp.ne.s32.totalorder %s145, %s147
      %p151 = scmp.eq.s32.totalorder %s22, 0
      %p152 = por %p150, %p151
      %p153 = scmp.ne.s32.totalorder %s145, %s147
      %p154 = scmp.eq.s32.totalorder %s27, 1
      %p155 = por %p153, %p154
      %p156 = scmp.ne.s32.totalorder %s147, %s148
      %p157 = scmp.eq.s32.totalorder %s27, 0
      %p158 = por %p156, %p157
      %p159 = scmp.ne.s32.totalorder %s147, %s148
      %p160 = scmp.eq.s32.totalorder %s28, 1
      %p161 = por %p159, %p160
      %p163 = scmp.ne.s32.totalorder %s148, %s162
      %p164 = scmp.eq.s32.totalorder %s28, 0
      %p165 = por %p163, %p164
      %s167 = sadd.s32 %s166, 1
      %p170 = scmp.eq.s32.totalorder %s22, 1
      %p171 = scmp.ne.s32.totalorder %s166, %s168
      %p172 = scmp.eq.s32.totalorder %s22, 0
      %p173 = por %p171, %p172
      %p174 = scmp.ne.s32.totalorder %s166, %s168
      %p175 = scmp.eq.s32.totalorder %s27, 1
      %p176 = por %p174, %p175
      %p177 = scmp.ne.s32.totalorder %s168, %s169
      %p178 = scmp.eq.s32.totalorder %s27, 0
      %p179 = por %p177, %p178
      %p180 = scmp.ne.s32.totalorder %s168, %s169
      %p181 = scmp.eq.s32.totalorder %s28, 1
      %p182 = por %p180, %p181
      %p184 = scmp.ne.s32.totalorder %s169, %s183
      %p185 = scmp.eq.s32.totalorder %s28, 0
      %p186 = por %p184, %p185
      %s188 = sadd.s32 %s187, 1
      %p191 = scmp.eq.s32.totalorder %s22, 1
      %p192 = scmp.ne.s32.totalorder %s187, %s189
      %p193 = scmp.eq.s32.totalorder %s22, 0
      %p194 = por %p192, %p193
      %p195 = scmp.ne.s32.totalorder %s187, %s189
      %p196 = scmp.eq.s32.totalorder %s27, 1
      %p197 = por %p195, %p196
      %p198 = scmp.ne.s32.totalorder %s189, %s190
      %p199 = scmp.eq.s32.totalorder %s27, 0
      %p200 = por %p198, %p199
      %p201 = scmp.ne.s32.totalorder %s189, %s190
      %p202 = scmp.eq.s32.totalorder %s28, 1
      %p203 = por %p201, %p202
      %p205 = scmp.ne.s32.totalorder %s190, %s204
      %p206 = scmp.eq.s32.totalorder %s28, 0
      %p207 = por %p205, %p206
      %s209 = sadd.s32 %s208, 1
      %p212 = scmp.eq.s32.totalorder %s22, 1
      %p213 = scmp.ne.s32.totalorder %s208, %s210
      %p214 = scmp.eq.s32.totalorder %s22, 0
      %p215 = por %p213, %p214
      %p216 = scmp.ne.s32.totalorder %s208, %s210
      %p217 = scmp.eq.s32.totalorder %s27, 1
      %p218 = por %p216, %p217
      %p219 = scmp.ne.s32.totalorder %s210, %s211
      %p220 = scmp.eq.s32.totalorder %s27, 0
      %p221 = por %p219, %p220
      %p222 = scmp.ne.s32.totalorder %s210, %s211
      %p223 = scmp.eq.s32.totalorder %s28, 1
      %p224 = por %p222, %p223
      %p226 = scmp.ne.s32.totalorder %s211, %s225
      %p227 = scmp.eq.s32.totalorder %s28, 0
      %p228 = por %p226, %p227
      %s230 = sadd.s32 %s229, 1
      %p233 = scmp.eq.s32.totalorder %s22, 1
      %p234 = scmp.ne.s32.totalorder %s229, %s231
      %p235 = scmp.eq.s32.totalorder %s22, 0
      %p236 = por %p234, %p235
      %p237 = scmp.ne.s32.totalorder %s229, %s231
      %p238 = scmp.eq.s32.totalorder %s27, 1
      %p239 = por %p237, %p238
      %p240 = scmp.ne.s32.totalorder %s231, %s232
      %p241 = scmp.eq.s32.totalorder %s27, 0
      %p242 = por %p240, %p241
      %p243 = scmp.ne.s32.totalorder %s231, %s232
      %p244 = scmp.eq.s32.totalorder %s28, 1
      %p245 = por %p243, %p244
      %p247 = scmp.ne.s32.totalorder %s232, %s246
      %p248 = scmp.eq.s32.totalorder %s28, 0
      %p249 = por %p247, %p248
      %s251 = sadd.s32 %s250, 1
      %p254 = scmp.eq.s32.totalorder %s22, 1
      %p255 = scmp.ne.s32.totalorder %s250, %s252
      %p256 = scmp.eq.s32.totalorder %s22, 0
      %p257 = por %p255, %p256
      %p258 = scmp.ne.s32.totalorder %s250, %s252
      %p259 = scmp.eq.s32.totalorder %s27, 1
      %p260 = por %p258, %p259
      %p261 = scmp.ne.s32.totalorder %s252, %s253
      %p262 = scmp.eq.s32.totalorder %s27, 0
      %p263 = por %p261, %p262
      %p264 = scmp.ne.s32.totalorder %s252, %s253
      %p265 = scmp.eq.s32.totalorder %s28, 1
      %p266 = por %p264, %p265
      %p268 = scmp.ne.s32.totalorder %s253, %s267
      %p269 = scmp.eq.s32.totalorder %s28, 0
      %p270 = por %p268, %p269
      %s272 = sadd.s32 %s271, 1
      %p275 = scmp.eq.s32.totalorder %s22, 1
      %p276 = scmp.ne.s32.totalorder %s271, %s273
      %p277 = scmp.eq.s32.totalorder %s22, 0
      %p278 = por %p276, %p277
      %p279 = scmp.ne.s32.totalorder %s271, %s273
      %p280 = scmp.eq.s32.totalorder %s27, 1
      %p281 = por %p279, %p280
      %p282 = scmp.ne.s32.totalorder %s273, %s274
      %p283 = scmp.eq.s32.totalorder %s27, 0
      %p284 = por %p282, %p283
      %p285 = scmp.ne.s32.totalorder %s273, %s274
      %p286 = scmp.eq.s32.totalorder %s28, 1
      %p287 = por %p285, %p286
      %p289 = scmp.ne.s32.totalorder %s274, %s288
      %p290 = scmp.eq.s32.totalorder %s28, 0
      %p291 = por %p289, %p290
      %s293 = sadd.s32 %s292, 1
      %p296 = scmp.eq.s32.totalorder %s22, 1
      %p297 = scmp.ne.s32.totalorder %s292, %s294
      %p298 = scmp.eq.s32.totalorder %s22, 0
      %p299 = por %p297, %p298
      %p300 = scmp.ne.s32.totalorder %s292, %s294
      %p301 = scmp.eq.s32.totalorder %s27, 1
      %p302 = por %p300, %p301
      %p303 = scmp.ne.s32.totalorder %s294, %s295
      %p304 = scmp.eq.s32.totalorder %s27, 0
      %p305 = por %p303, %p304
      %p306 = scmp.ne.s32.totalorder %s294, %s295
      %p307 = scmp.eq.s32.totalorder %s28, 1
      %p308 = por %p306, %p307
      %p310 = scmp.ne.s32.totalorder %s295, %s309
      %p311 = scmp.eq.s32.totalorder %s28, 0
      %p312 = por %p310, %p311
      %s313 = ssub.s32 %s22, %s29
      %p314 = scmp.eq.s32.totalorder %s313, 0
      %s316 = sadd.s32 %s315, 1
      %s317 = scalar_select %p314, %s315, %s316
      %p320 = pneg %p314
      %p321 = scmp.eq.s32.totalorder %s22, 1
      %p322 = por %p320, %p321
      %p323 = scmp.ne.s32.totalorder %s315, %s318
      %p324 = scmp.eq.s32.totalorder %s22, 0
      %p325 = por %p323, %p324
      %p326 = scmp.ne.s32.totalorder %s315, %s318
      %p327 = scmp.eq.s32.totalorder %s27, 1
      %p328 = por %p326, %p327
      %p329 = scmp.ne.s32.totalorder %s318, %s319
      %p330 = scmp.eq.s32.totalorder %s27, 0
      %p331 = por %p329, %p330
      %p332 = scmp.ne.s32.totalorder %s318, %s319
      %p333 = scmp.eq.s32.totalorder %s28, 1
      %p334 = por %p332, %p333
      %p336 = scmp.ne.s32.totalorder %s319, %s335
      %p337 = scmp.eq.s32.totalorder %s28, 0
      %p338 = por %p336, %p337
      %p339 = scmp.le.s32.totalorder 1, %s22
      %p340 = scmp.lt.s32.totalorder %s22, 3
      %p341 = pnand %p339, %p340
      %p342 = pneg %p341
      // Predicated region
      $region9: #{tpu_custom_call.1} parent=5 // pred_check
        _
      $region10: #{tpu_custom_call.1} parent=5 // pred_check_branch
        %344 = sbr.rel (%p341) target = $region12
      $region11: #{tpu_custom_call.1} parent=5 // pred_region
        %s345 = ssub.s32 %s22, 1
        // Predicated region
        $region13: #{tpu_custom_call.1} parent=11 // pred_check
          %p346 = pneg %p95
        $region14: #{tpu_custom_call.1} parent=11 // pred_check_branch
          %348 = sbr.rel (%p346) target = $region16
        $region15: #{tpu_custom_call.1} parent=11 // pred_region
          _
        $region16: #{tpu_custom_call.1} parent=11 // pred_fallthru
          _
        // Predicated region
        $region17: #{tpu_custom_call.1} parent=11 // pred_check
          %p349 = pneg %p116
        $region18: #{tpu_custom_call.1} parent=11 // pred_check_branch
          %351 = sbr.rel (%p349) target = $region20
        $region19: #{tpu_custom_call.1} parent=11 // pred_region
          _
        $region20: #{tpu_custom_call.1} parent=11 // pred_fallthru
          _
        // Predicated region
        $region21: #{tpu_custom_call.1} parent=11 // pred_check
          %p352 = pneg %p137
        $region22: #{tpu_custom_call.1} parent=11 // pred_check_branch
          %354 = sbr.rel (%p352) target = $region24
        $region23: #{tpu_custom_call.1} parent=11 // pred_region
          _
        $region24: #{tpu_custom_call.1} parent=11 // pred_fallthru
          _
        // Predicated region
        $region25: #{tpu_custom_call.1} parent=11 // pred_check
          %p355 = pneg %p158
        $region26: #{tpu_custom_call.1} parent=11 // pred_check_branch
          %357 = sbr.rel (%p355) target = $region28
        $region27: #{tpu_custom_call.1} parent=11 // pred_region
          _
        $region28: #{tpu_custom_call.1} parent=11 // pred_fallthru
          _
        // Predicated region
        $region29: #{tpu_custom_call.1} parent=11 // pred_check
          %p358 = pneg %p179
        $region30: #{tpu_custom_call.1} parent=11 // pred_check_branch
          %360 = sbr.rel (%p358) target = $region32
        $region31: #{tpu_custom_call.1} parent=11 // pred_region
          _
        $region32: #{tpu_custom_call.1} parent=11 // pred_fallthru
          _
        // Predicated region
        $region33: #{tpu_custom_call.1} parent=11 // pred_check
          %p361 = pneg %p200
        $region34: #{tpu_custom_call.1} parent=11 // pred_check_branch
          %363 = sbr.rel (%p361) target = $region36
        $region35: #{tpu_custom_call.1} parent=11 // pred_region
          _
        $region36: #{tpu_custom_call.1} parent=11 // pred_fallthru
          _
        // Predicated region
        $region37: #{tpu_custom_call.1} parent=11 // pred_check
          %p364 = pneg %p221
        $region38: #{tpu_custom_call.1} parent=11 // pred_check_branch
          %366 = sbr.rel (%p364) target = $region40
        $region39: #{tpu_custom_call.1} parent=11 // pred_region
          _
        $region40: #{tpu_custom_call.1} parent=11 // pred_fallthru
          _
        // Predicated region
        $region41: #{tpu_custom_call.1} parent=11 // pred_check
          %p367 = pneg %p242
        $region42: #{tpu_custom_call.1} parent=11 // pred_check_branch
          %369 = sbr.rel (%p367) target = $region44
        $region43: #{tpu_custom_call.1} parent=11 // pred_region
          _
        $region44: #{tpu_custom_call.1} parent=11 // pred_fallthru
          _
        // Predicated region
        $region45: #{tpu_custom_call.1} parent=11 // pred_check
          %p370 = pneg %p263
        $region46: #{tpu_custom_call.1} parent=11 // pred_check_branch
          %372 = sbr.rel (%p370) target = $region48
        $region47: #{tpu_custom_call.1} parent=11 // pred_region
          _
        $region48: #{tpu_custom_call.1} parent=11 // pred_fallthru
          _
        // Predicated region
        $region49: #{tpu_custom_call.1} parent=11 // pred_check
          %p373 = pneg %p284
        $region50: #{tpu_custom_call.1} parent=11 // pred_check_branch
          %375 = sbr.rel (%p373) target = $region52
        $region51: #{tpu_custom_call.1} parent=11 // pred_region
          _
        $region52: #{tpu_custom_call.1} parent=11 // pred_fallthru
          _
        // Predicated region
        $region53: #{tpu_custom_call.1} parent=11 // pred_check
          %p376 = pneg %p305
        $region54: #{tpu_custom_call.1} parent=11 // pred_check_branch
          %378 = sbr.rel (%p376) target = $region56
        $region55: #{tpu_custom_call.1} parent=11 // pred_region
          _
        $region56: #{tpu_custom_call.1} parent=11 // pred_fallthru
          _
      $region12: #{tpu_custom_call.1} parent=5 // pred_fallthru
        _
      %p379 = scmp.lt.s32.totalorder %s22, 2
      // Predicated region
      $region57: #{tpu_custom_call.1} parent=5 // pred_check
        %p380 = pneg %p379
      $region58: #{tpu_custom_call.1} parent=5 // pred_check_branch
        %382 = sbr.rel (%p380) target = $region60
      $region59: #{tpu_custom_call.1} parent=5 // pred_region
        // Predicated region
        $region61: #{tpu_custom_call.1} parent=59 // pred_check
          %p383 = pneg %p42
        $region62: #{tpu_custom_call.1} parent=59 // pred_check_branch
          %385 = sbr.rel (%p383) target = $region64
        $region63: #{tpu_custom_call.1} parent=59 // pred_region
          %p386 = scmp.lt.s32.totalorder %s22, 1
          %s387 = scalar_select %p386, %s22, 1
          %s388 = smul.addr %s387, 2
          %s389 = smul.addr %s388, 8
          %s390 = scalar_lea.vmem %s0, %s389
        $region64: #{tpu_custom_call.1} parent=59 // pred_fallthru
          _
        // Predicated region
        $region65: #{tpu_custom_call.1} parent=59 // pred_check
          %p391 = pneg %p68
        $region66: #{tpu_custom_call.1} parent=59 // pred_check_branch
          %393 = sbr.rel (%p391) target = $region68
        $region67: #{tpu_custom_call.1} parent=59 // pred_region
          %p394 = scmp.lt.s32.totalorder %s22, 1
          %s395 = scalar_select %p394, %s22, 1
          %s396 = scalar_lea.vmem %s1, %s395
        $region68: #{tpu_custom_call.1} parent=59 // pred_fallthru
          _
      $region60: #{tpu_custom_call.1} parent=5 // pred_fallthru
        _
      %p397 = scmp.le.s32.totalorder 1, %s22
      %p398 = scmp.lt.s32.totalorder %s22, 3
      %p399 = pnand %p397, %p398
      %p400 = pneg %p399
      // Predicated region
      $region69: #{tpu_custom_call.1} parent=5 // pred_check
        _
      $region70: #{tpu_custom_call.1} parent=5 // pred_check_branch
        %402 = sbr.rel (%p399) target = $region72
      $region71: #{tpu_custom_call.1} parent=5 // pred_region
        %s403 = ssub.s32 %s22, 1
        %p404 = scmp.lt.s32.totalorder %s27, 1
        %s405 = scalar_select %p404, %s27, 1
        %s406 = smul.addr %s405, 2
        %s407 = smul.addr %s406, 8
        %s408 = scalar_lea.vmem %s0, %s407
        %p409 = pneg %p48
        %p410 = pneg %p45
        %p411 = scmp.lt.s32.totalorder %s27, 1
        %s412 = scalar_select %p411, %s27, 1
        %s413 = scalar_lea.vmem %s1, %s412
        %p414 = pneg %p74
        %p415 = pneg %p71
        %p416 = pneg %p95
        %p417 = pneg %p92
        %p418 = pneg %p116
        %p419 = pneg %p113
        %p420 = pneg %p137
        %p421 = pneg %p134
        %p422 = pneg %p158
        %p423 = pneg %p155
        %p424 = pneg %p179
        %p425 = pneg %p176
        %p426 = pneg %p200
        %p427 = pneg %p197
        %p428 = pneg %p221
        %p429 = pneg %p218
        %p430 = pneg %p242
        %p431 = pneg %p239
        %p432 = pneg %p263
        %p433 = pneg %p260
        %p434 = pneg %p284
        %p435 = pneg %p281
        %p436 = pneg %p305
        %p437 = pneg %p302
        %p438 = pneg %p331
        %p439 = pneg %p328
        %s440 = sand.u32 %s318, 1
        %s441 = scalar_lea.sflag [#allocation3], %s440
        %s442 = sand.u32 %s318, 1
        %s443 = scalar_lea.vmem [#allocation2], %s442
        %p444 = scmp.lt.s32.totalorder %s27, 1
        %s445 = scalar_select %p444, %s27, 1
        %s446 = smul.addr %s445, 2
        %s447 = smul.addr %s446, 8
        %s448 = scalar_lea.vmem %s0, %s447
        %p449 = scmp.lt.s32.totalorder %s27, 1
        %s450 = scalar_select %p449, %s27, 1
        %s451 = scalar_lea.vmem %s1, %s450
        %v453 = vld [vmem:[%s448] sm:$0xff]
        %v454 = vld [vmem:[%s448 + $0x8] sm:$0xff]
        %v455 = vld [vmem:[%s451] sm:$0x1]
        %v456 = vmul.f32 %v455, -1e+30
        %v457 = vpack.c.bf16 %v454, %v453
        %v458 = vld [vmem:[%s2] sm:$0xf]
        %v459 = vld [vmem:[%s2 + $0x4] sm:$0xf]
        %v462 = vunpack.c.l.b16 %v458
        %v463 = vunpack.c.l.b16 %v459
        %v464 = vpack.c.b16 %v463, %v462
        %vm466 = vcmask 130048
        %v468 = vsel %vm466, %v457, 0
        %470 = vmatpush.bf16.msra.mxu0 0
        %471 = vmatpush.bf16.msra.mxu0 0
        %472 = vmatpush.bf16.msra.mxu0 0
        %473 = vmatpush.bf16.msra.mxu0 0
        %474 = vmatpush.bf16.msra.mxu0 0
        %475 = vmatpush.bf16.msra.mxu0 0
        %476 = vmatpush.bf16.msra.mxu0 0
        %477 = vmatpush.bf16.msra.mxu0 %v464
        %478 = vmatmul.bf16.gmra.mxu0 %v468
        %v479 = vpop.f32.mrf.mxu0
        %v480 = vadd.f32 0.0, %v479
        %v481 = vpop.f32.mrf.mxu0
        %v482 = vadd.f32 0.0, %v481
        %483 = vdwg.mxu0
        %v484 = vpack.c.bf16 %v482, %v480
        %v485 = vld [vmem:[%s3] sm:$0xf]
        %v486 = vld [vmem:[%s3 + $0x4] sm:$0xf]
        %v487 = vld [vmem:[%s3 + $0x8] sm:$0xf]
        %v488 = vld [vmem:[%s3 + $0xc] sm:$0xf]
        %v493 = vunpack.c.l.b16 %v485
        %v494 = vunpack.c.l.b16 %v486
        %v495 = vunpack.c.l.b16 %v487
        %v496 = vunpack.c.l.b16 %v488
        %v497 = vpack.c.b16 %v494, %v493
        %v498 = vpack.c.b16 %v496, %v495
        %vm501 = vcmask 261120
        %v503 = vsel %vm501, %v484, 0
        %505 = vmatpush.bf16.msra.mxu0 0
        %506 = vmatpush.bf16.msra.mxu0 0
        %507 = vmatpush.bf16.msra.mxu0 0
        %508 = vmatpush.bf16.msra.mxu0 0
        %509 = vmatpush.bf16.msra.mxu0 0
        %510 = vmatpush.bf16.msra.mxu0 0
        %511 = vmatpush.bf16.msra.mxu0 %v498
        %512 = vmatpush.bf16.msra.mxu0 %v497
        %513 = vmatmul.bf16.gmra.mxu0 %v503
        %v514 = vpop.f32.mrf.mxu0
        %v515 = vadd.f32 0.0, %v514
        %v516 = vpop.f32.mrf.mxu0
        %v517 = vadd.f32 0.0, %v516
        %518 = vdwg.mxu0
        %v519 = vand.u32 2147483647, %v515
        %v520 = vand.u32 2147483647, %v517
        %v521 = vsub.f32 0.0, %v519
        %v522 = vsub.f32 0.0, %v520
        %v523 = vmul.f32 %v521, 1.442695
        %v524 = vpow.pop %v523
        %v525 = vmul.f32 %v522, 1.442695
        %v526 = vpow.pop %v525
        %vm527 = vcmp.ge.f32.partialorder %v515, 0.0
        %vm528 = vcmp.ge.f32.partialorder %v517, 0.0
        %v529 = vmul.f32 %v524, 2.0
        %v530 = vmul.f32 %v526, 2.0
        %v531 = vadd.f32 %v529, 1.0
        %v532 = vadd.f32 %v530, 1.0
        %v533 = vadd.f32 %v524, 2.0
        %v534 = vadd.f32 %v526, 2.0
        %v535 = vmul.f32 %v524, %v533
        %v536 = vmul.f32 %v526, %v534
        %v537 = vsel %vm527, %v531, %v535
        %v538 = vsel %vm528, %v532, %v536
        %v539 = vmul.f32 %v529, %v524
        %v540 = vmul.f32 %v530, %v526
        %v541 = vadd.f32 %v531, %v539
        %v542 = vadd.f32 %v532, %v540
        %v543 = vadd.f32 %v535, 2.0
        %v544 = vadd.f32 %v536, 2.0
        %v545 = vsel %vm527, %v541, %v543
        %v546 = vsel %vm528, %v542, %v544
        %v547 = vmul.f32 %v515, %v537
        %v548 = vmul.f32 %v517, %v538
        %v549 = vrcp.pop %v545
        %v550 = vrcp.pop %v546
        %v551 = vmul.f32 %v547, %v549
        %v552 = vmul.f32 %v548, %v550
        %v553 = vpack.c.bf16 %v552, %v551
        %s554 = scalar_lea.vmem %s3, 16
        %v555 = vld [vmem:[%s554] sm:$0xf]
        %v556 = vld [vmem:[%s554 + $0x4] sm:$0xf]
        %v557 = vld [vmem:[%s554 + $0x8] sm:$0xf]
        %v558 = vld [vmem:[%s554 + $0xc] sm:$0xf]
        %v563 = vunpack.c.l.b16 %v555
        %v564 = vunpack.c.l.b16 %v556
        %v565 = vunpack.c.l.b16 %v557
        %v566 = vunpack.c.l.b16 %v558
        %v567 = vpack.c.b16 %v564, %v563
        %v568 = vpack.c.b16 %v566, %v565
        %v572 = vsel %vm501, %v553, 0
        %574 = vmatpush.bf16.msra.mxu0 0
        %575 = vmatpush.bf16.msra.mxu0 0
        %576 = vmatpush.bf16.msra.mxu0 0
        %577 = vmatpush.bf16.msra.mxu0 0
        %578 = vmatpush.bf16.msra.mxu0 0
        %579 = vmatpush.bf16.msra.mxu0 0
        %580 = vmatpush.bf16.msra.mxu0 %v568
        %581 = vmatpush.bf16.msra.mxu0 %v567
        %582 = vmatmul.bf16.gmra.mxu0 %v572
        %v583 = vpop.f32.mrf.mxu0
        %v584 = vadd.f32 0.0, %v583
        %v585 = vpop.f32.mrf.mxu0
        %v586 = vadd.f32 0.0, %v585
        %587 = vdwg.mxu0
        %v588 = vand.u32 2147483647, %v584
        %v589 = vand.u32 2147483647, %v586
        %v590 = vsub.f32 0.0, %v588
        %v591 = vsub.f32 0.0, %v589
        %v592 = vmul.f32 %v590, 1.442695
        %v593 = vpow.pop %v592
        %v594 = vmul.f32 %v591, 1.442695
        %v595 = vpow.pop %v594
        %vm596 = vcmp.ge.f32.partialorder %v584, 0.0
        %vm597 = vcmp.ge.f32.partialorder %v586, 0.0
        %v598 = vmul.f32 %v593, 2.0
        %v599 = vmul.f32 %v595, 2.0
        %v600 = vadd.f32 %v598, 1.0
        %v601 = vadd.f32 %v599, 1.0
        %v602 = vadd.f32 %v593, 2.0
        %v603 = vadd.f32 %v595, 2.0
        %v604 = vmul.f32 %v593, %v602
        %v605 = vmul.f32 %v595, %v603
        %v606 = vsel %vm596, %v600, %v604
        %v607 = vsel %vm597, %v601, %v605
        %v608 = vmul.f32 %v598, %v593
        %v609 = vmul.f32 %v599, %v595
        %v610 = vadd.f32 %v600, %v608
        %v611 = vadd.f32 %v601, %v609
        %v612 = vadd.f32 %v604, 2.0
        %v613 = vadd.f32 %v605, 2.0
        %v614 = vsel %vm596, %v610, %v612
        %v615 = vsel %vm597, %v611, %v613
        %v616 = vmul.f32 %v584, %v606
        %v617 = vmul.f32 %v586, %v607
        %v618 = vrcp.pop %v614
        %v619 = vrcp.pop %v615
        %v620 = vmul.f32 %v616, %v618
        %v621 = vmul.f32 %v617, %v619
        %v622 = vpack.c.bf16 %v620, %v620
        %v623 = vpack.c.bf16 %v621, %v621
        %v626 = vunpack.c.l.b16 %v622
        %v627 = vunpack.c.l.b16 %v623
        %v628 = vpack.c.b16 %v627, %v626
        %v629 = vrot.slane %v628, 7
        %vm630 = vcmask 1040384
        %v633 = vsel %vm630, 0, %v629
        %v634 = vsel %vm630, %v629, 0
        %vm635 = vsmask.f32 7424
        %v636 = vshrl.u32 %v633, 16
        %v638 = vshll.u32 %v633, 16
        %v640 = vrot.slane %v638, 1
        %v641 = vor.u32 %v636, %v640
        %v642 = vshll.u32 %v634, 16
        %v644 = vrot.slane %v642, 1
        %v645 = vsel %vm635, %v641, %v644
        %646 = vrot.lane.b32.xlu0 %v645, 32
        %v647 = vpop.permute.xlu0 %646
        %vm650 = vcmask 1046528
        %v651 = vrot.slane %v633, 1
        %v652 = vrot.slane %v634, 1
        %v653 = vsel %vm650, %v651, %v652
        %654 = vrot.lane.b32.xlu0 %v653, 64
        %v655 = vpop.permute.xlu0 %654
        %vm656 = vsmask.f32 6400
        %v657 = vrot.slane %v636, 1
        %v658 = vrot.slane %v638, 2
        %v659 = vor.u32 %v657, %v658
        %v660 = vshrl.u32 %v634, 16
        %v662 = vrot.slane %v660, 1
        %v663 = vrot.slane %v642, 2
        %v664 = vor.u32 %v662, %v663
        %v665 = vsel %vm656, %v659, %v664
        %666 = vrot.lane.b32.xlu0 %v665, 96
        %v667 = vpop.permute.xlu0 %666
        %vm668 = vcmask 1045504
        %v669 = vrot.slane %v633, 2
        %v670 = vrot.slane %v634, 2
        %v671 = vsel %vm668, %v669, %v670
        %v673 = vsel %vm501, %v633, %v647
        %vm674 = vcmask 523264
        %v676 = vsel %vm674, %v673, %v655
        %vm677 = vcmask 785408
        %v679 = vsel %vm677, %v676, %v667
        %v681 = vld [vmem:[%s4] sm:$0xf]
        %v682 = vld [vmem:[%s4 + $0x4] sm:$0xf]
        %v683 = vld [vmem:[%s4 + $0x8] sm:$0xf]
        %v684 = vld [vmem:[%s4 + $0xc] sm:$0xf]
        %v685 = vld [vmem:[%s4 + $0x10] sm:$0xf]
        %v686 = vld [vmem:[%s4 + $0x14] sm:$0xf]
        %v687 = vld [vmem:[%s4 + $0x18] sm:$0xf]
        %v688 = vld [vmem:[%s4 + $0x1c] sm:$0xf]
        %v689 = vld [vmem:[%s4 + $0x20] sm:$0xf]
        %v690 = vld [vmem:[%s4 + $0x24] sm:$0xf]
        %v691 = vld [vmem:[%s4 + $0x28] sm:$0xf]
        %v692 = vld [vmem:[%s4 + $0x2c] sm:$0xf]
        %v693 = vld [vmem:[%s4 + $0x30] sm:$0xf]
        %v694 = vld [vmem:[%s4 + $0x34] sm:$0xf]
        %v695 = vld [vmem:[%s4 + $0x38] sm:$0xf]
        %v696 = vld [vmem:[%s4 + $0x3c] sm:$0xf]
        %v697 = vld [vmem:[%s4 + $0x40] sm:$0xf]
        %v698 = vld [vmem:[%s4 + $0x44] sm:$0xf]
        %v699 = vld [vmem:[%s4 + $0x48] sm:$0xf]
        %v700 = vld [vmem:[%s4 + $0x4c] sm:$0xf]
        %v701 = vld [vmem:[%s5] sm:$0x1]
        %v703 = vperm.slane %v701, 0
        %v725 = vunpack.c.l.b16 %v681
        %v726 = vunpack.c.l.b16 %v682
        %v727 = vunpack.c.l.b16 %v683
        %v728 = vunpack.c.l.b16 %v684
        %v729 = vunpack.c.l.b16 %v685
        %v730 = vunpack.c.l.b16 %v686
        %v731 = vunpack.c.l.b16 %v687
        %v732 = vunpack.c.l.b16 %v688
        %v733 = vunpack.c.l.b16 %v689
        %v734 = vunpack.c.l.b16 %v690
        %v735 = vunpack.c.l.b16 %v691
        %v736 = vunpack.c.l.b16 %v692
        %v737 = vunpack.c.l.b16 %v693
        %v738 = vunpack.c.l.b16 %v694
        %v739 = vunpack.c.l.b16 %v695
        %v740 = vunpack.c.l.b16 %v696
        %v741 = vunpack.c.l.b16 %v697
        %v742 = vunpack.c.l.b16 %v698
        %v743 = vunpack.c.l.b16 %v699
        %v744 = vunpack.c.l.b16 %v700
        %v745 = vpack.c.b16 %v726, %v725
        %v746 = vpack.c.b16 %v728, %v727
        %v747 = vpack.c.b16 %v730, %v729
        %v748 = vpack.c.b16 %v732, %v731
        %v749 = vpack.c.b16 %v734, %v733
        %v750 = vpack.c.b16 %v736, %v735
        %v751 = vpack.c.b16 %v738, %v737
        %v752 = vpack.c.b16 %v740, %v739
        %v753 = vpack.c.b16 %v742, %v741
        %v754 = vpack.c.b16 %v744, %v743
        %v766 = vsel %vm501, %v671, 0
        %768 = vmatpush.bf16.msra.mxu0 %v752
        %769 = vmatpush.bf16.msra.mxu0 %v751
        %770 = vmatpush.bf16.msra.mxu0 %v750
        %771 = vmatpush.bf16.msra.mxu0 %v749
        %772 = vmatpush.bf16.msra.mxu0 %v748
        %773 = vmatpush.bf16.msra.mxu0 %v747
        %774 = vmatpush.bf16.msra.mxu0 %v746
        %775 = vmatpush.bf16.msra.mxu0 %v745
        %776 = vmatmul.bf16.gmra.mxu0 %v679
        %v777 = vpop.f32.mrf.mxu0
        %v778 = vadd.f32 %v703, %v777
        %v779 = vpop.f32.mrf.mxu0
        %v780 = vadd.f32 %v703, %v779
        %781 = vdwg.mxu0
        %782 = vmatpush.bf16.msra.mxu0 0
        %783 = vmatpush.bf16.msra.mxu0 0
        %784 = vmatpush.bf16.msra.mxu0 0
        %785 = vmatpush.bf16.msra.mxu0 0
        %786 = vmatpush.bf16.msra.mxu0 0
        %787 = vmatpush.bf16.msra.mxu0 0
        %788 = vmatpush.bf16.msra.mxu0 %v754
        %789 = vmatpush.bf16.msra.mxu0 %v753
        %790 = vmatmul.bf16.gmra.mxu0 %v766
        %v791 = vpop.f32.mrf.mxu0
        %v792 = vadd.f32 %v778, %v791
        %v793 = vpop.f32.mrf.mxu0
        %v794 = vadd.f32 %v780, %v793
        %795 = vdwg.mxu0
        %v796 = vand.u32 2147483647, %v792
        %v797 = vand.u32 2147483647, %v794
        %v798 = vsub.f32 0.0, %v796
        %v799 = vsub.f32 0.0, %v797
        %v800 = vmul.f32 %v798, 1.442695
        %v801 = vpow.pop %v800
        %v802 = vmul.f32 %v799, 1.442695
        %v803 = vpow.pop %v802
        %vm804 = vcmp.ge.f32.partialorder %v792, 0.0
        %vm805 = vcmp.ge.f32.partialorder %v794, 0.0
        %v806 = vmul.f32 %v801, 2.0
        %v807 = vmul.f32 %v803, 2.0
        %v808 = vadd.f32 %v806, 1.0
        %v809 = vadd.f32 %v807, 1.0
        %v810 = vadd.f32 %v801, 2.0
        %v811 = vadd.f32 %v803, 2.0
        %v812 = vmul.f32 %v801, %v810
        %v813 = vmul.f32 %v803, %v811
        %v814 = vsel %vm804, %v808, %v812
        %v815 = vsel %vm805, %v809, %v813
        %v816 = vmul.f32 %v806, %v801
        %v817 = vmul.f32 %v807, %v803
        %v818 = vadd.f32 %v808, %v816
        %v819 = vadd.f32 %v809, %v817
        %v820 = vadd.f32 %v812, 2.0
        %v821 = vadd.f32 %v813, 2.0
        %v822 = vsel %vm804, %v818, %v820
        %v823 = vsel %vm805, %v819, %v821
        %v824 = vmul.f32 %v792, %v814
        %v825 = vmul.f32 %v794, %v815
        %v826 = vrcp.pop %v822
        %v827 = vrcp.pop %v823
        %v828 = vmul.f32 %v824, %v826
        %v829 = vmul.f32 %v825, %v827
        %v830 = vand.u32 2147483647, %v828
        %v831 = vand.u32 2147483647, %v829
        %v832 = vsub.f32 0.0, %v830
        %v833 = vsub.f32 0.0, %v831
        %v834 = vmul.f32 %v832, 1.442695
        %v835 = vpow.pop %v834
        %v836 = vmul.f32 %v833, 1.442695
        %v837 = vpow.pop %v836
        %vm838 = vcmp.ge.f32.partialorder %v828, 0.0
        %vm839 = vcmp.ge.f32.partialorder %v829, 0.0
        %v840 = vsel %vm838, 1.0, %v835
        %v841 = vsel %vm839, 1.0, %v837
        %v842 = vadd.f32 %v835, 1.0
        %v843 = vadd.f32 %v837, 1.0
        %v844 = vrcp.pop %v842
        %v845 = vrcp.pop %v843
        %v846 = vmul.f32 %v840, %v844
        %v847 = vmul.f32 %v841, %v845
        %850 = vrot.lane.b32.xlu0 %v846, 96
        %v851 = vpop.permute.xlu0 %850
        %852 = vrot.lane.b32.xlu0 %v847, 96
        %v853 = vpop.permute.xlu0 %852
        %v856 = vmul.f32 %v828, %v851
        %v857 = vmul.f32 %v829, %v853
        %v858 = vadd.f32 %v620, %v856
        %v859 = vadd.f32 %v621, %v857
        %v860 = vpack.c.bf16 %v858, %v858
        %v861 = vpack.c.bf16 %v859, %v859
        %v864 = vunpack.c.l.b16 %v860
        %v865 = vunpack.c.l.b16 %v861
        %v866 = vpack.c.b16 %v865, %v864
        %v867 = vrot.slane %v866, 7
        %v869 = vsel %vm630, 0, %v867
        %v870 = vsel %vm630, %v867, 0
        %v871 = vshrl.u32 %v869, 16
        %v873 = vshll.u32 %v869, 16
        %v875 = vrot.slane %v873, 1
        %v876 = vor.u32 %v871, %v875
        %v877 = vshll.u32 %v870, 16
        %v879 = vrot.slane %v877, 1
        %v880 = vsel %vm635, %v876, %v879
        %881 = vrot.lane.b32.xlu0 %v880, 32
        %v882 = vpop.permute.xlu0 %881
        %v885 = vrot.slane %v869, 1
        %v886 = vrot.slane %v870, 1
        %v887 = vsel %vm650, %v885, %v886
        %888 = vrot.lane.b32.xlu0 %v887, 64
        %v889 = vpop.permute.xlu0 %888
        %v890 = vrot.slane %v871, 1
        %v891 = vrot.slane %v873, 2
        %v892 = vor.u32 %v890, %v891
        %v893 = vshrl.u32 %v870, 16
        %v895 = vrot.slane %v893, 1
        %v896 = vrot.slane %v877, 2
        %v897 = vor.u32 %v895, %v896
        %v898 = vsel %vm656, %v892, %v897
        %899 = vrot.lane.b32.xlu0 %v898, 96
        %v900 = vpop.permute.xlu0 %899
        %v901 = vrot.slane %v869, 2
        %v902 = vrot.slane %v870, 2
        %v903 = vsel %vm668, %v901, %v902
        %v905 = vsel %vm501, %v869, %v882
        %v907 = vsel %vm674, %v905, %v889
        %v909 = vsel %vm677, %v907, %v900
        %s911 = scalar_lea.vmem %s4, 80
        %v912 = vld [vmem:[%s911] sm:$0xf]
        %v913 = vld [vmem:[%s911 + $0x4] sm:$0xf]
        %v914 = vld [vmem:[%s911 + $0x8] sm:$0xf]
        %v915 = vld [vmem:[%s911 + $0xc] sm:$0xf]
        %v916 = vld [vmem:[%s911 + $0x10] sm:$0xf]
        %v917 = vld [vmem:[%s911 + $0x14] sm:$0xf]
        %v918 = vld [vmem:[%s911 + $0x18] sm:$0xf]
        %v919 = vld [vmem:[%s911 + $0x1c] sm:$0xf]
        %v920 = vld [vmem:[%s911 + $0x20] sm:$0xf]
        %v921 = vld [vmem:[%s911 + $0x24] sm:$0xf]
        %v922 = vld [vmem:[%s911 + $0x28] sm:$0xf]
        %v923 = vld [vmem:[%s911 + $0x2c] sm:$0xf]
        %v924 = vld [vmem:[%s911 + $0x30] sm:$0xf]
        %v925 = vld [vmem:[%s911 + $0x34] sm:$0xf]
        %v926 = vld [vmem:[%s911 + $0x38] sm:$0xf]
        %v927 = vld [vmem:[%s911 + $0x3c] sm:$0xf]
        %v928 = vld [vmem:[%s911 + $0x40] sm:$0xf]
        %v929 = vld [vmem:[%s911 + $0x44] sm:$0xf]
        %v930 = vld [vmem:[%s911 + $0x48] sm:$0xf]
        %v931 = vld [vmem:[%s911 + $0x4c] sm:$0xf]
        %s932 = scalar_lea.vmem %s5, 1
        %v933 = vld [vmem:[%s932] sm:$0x1]
        %v935 = vperm.slane %v933, 0
        %v957 = vunpack.c.l.b16 %v912
        %v958 = vunpack.c.l.b16 %v913
        %v959 = vunpack.c.l.b16 %v914
        %v960 = vunpack.c.l.b16 %v915
        %v961 = vunpack.c.l.b16 %v916
        %v962 = vunpack.c.l.b16 %v917
        %v963 = vunpack.c.l.b16 %v918
        %v964 = vunpack.c.l.b16 %v919
        %v965 = vunpack.c.l.b16 %v920
        %v966 = vunpack.c.l.b16 %v921
        %v967 = vunpack.c.l.b16 %v922
        %v968 = vunpack.c.l.b16 %v923
        %v969 = vunpack.c.l.b16 %v924
        %v970 = vunpack.c.l.b16 %v925
        %v971 = vunpack.c.l.b16 %v926
        %v972 = vunpack.c.l.b16 %v927
        %v973 = vunpack.c.l.b16 %v928
        %v974 = vunpack.c.l.b16 %v929
        %v975 = vunpack.c.l.b16 %v930
        %v976 = vunpack.c.l.b16 %v931
        %v977 = vpack.c.b16 %v958, %v957
        %v978 = vpack.c.b16 %v960, %v959
        %v979 = vpack.c.b16 %v962, %v961
        %v980 = vpack.c.b16 %v964, %v963
        %v981 = vpack.c.b16 %v966, %v965
        %v982 = vpack.c.b16 %v968, %v967
        %v983 = vpack.c.b16 %v970, %v969
        %v984 = vpack.c.b16 %v972, %v971
        %v985 = vpack.c.b16 %v974, %v973
        %v986 = vpack.c.b16 %v976, %v975
        %v998 = vsel %vm501, %v903, 0
        %1000 = vmatpush.bf16.msra.mxu0 %v984
        %1001 = vmatpush.bf16.msra.mxu0 %v983
        %1002 = vmatpush.bf16.msra.mxu0 %v982
        %1003 = vmatpush.bf16.msra.mxu0 %v981
        %1004 = vmatpush.bf16.msra.mxu0 %v980
        %1005 = vmatpush.bf16.msra.mxu0 %v979
        %1006 = vmatpush.bf16.msra.mxu0 %v978
        %1007 = vmatpush.bf16.msra.mxu0 %v977
        %1008 = vmatmul.bf16.gmra.mxu0 %v909
        %v1009 = vpop.f32.mrf.mxu0
        %v1010 = vadd.f32 %v935, %v1009
        %v1011 = vpop.f32.mrf.mxu0
        %v1012 = vadd.f32 %v935, %v1011
        %1013 = vdwg.mxu0
        %1014 = vmatpush.bf16.msra.mxu0 0
        %1015 = vmatpush.bf16.msra.mxu0 0
        %1016 = vmatpush.bf16.msra.mxu0 0
        %1017 = vmatpush.bf16.msra.mxu0 0
        %1018 = vmatpush.bf16.msra.mxu0 0
        %1019 = vmatpush.bf16.msra.mxu0 0
        %1020 = vmatpush.bf16.msra.mxu0 %v986
        %1021 = vmatpush.bf16.msra.mxu0 %v985
        %1022 = vmatmul.bf16.gmra.mxu0 %v998
        %v1023 = vpop.f32.mrf.mxu0
        %v1024 = vadd.f32 %v1010, %v1023
        %v1025 = vpop.f32.mrf.mxu0
        %v1026 = vadd.f32 %v1012, %v1025
        %1027 = vdwg.mxu0
        %v1028 = vand.u32 2147483647, %v1024
        %v1029 = vand.u32 2147483647, %v1026
        %v1030 = vsub.f32 0.0, %v1028
        %v1031 = vsub.f32 0.0, %v1029
        %v1032 = vmul.f32 %v1030, 1.442695
        %v1033 = vpow.pop %v1032
        %v1034 = vmul.f32 %v1031, 1.442695
        %v1035 = vpow.pop %v1034
        %vm1036 = vcmp.ge.f32.partialorder %v1024, 0.0
        %vm1037 = vcmp.ge.f32.partialorder %v1026, 0.0
        %v1038 = vmul.f32 %v1033, 2.0
        %v1039 = vmul.f32 %v1035, 2.0
        %v1040 = vadd.f32 %v1038, 1.0
        %v1041 = vadd.f32 %v1039, 1.0
        %v1042 = vadd.f32 %v1033, 2.0
        %v1043 = vadd.f32 %v1035, 2.0
        %v1044 = vmul.f32 %v1033, %v1042
        %v1045 = vmul.f32 %v1035, %v1043
        %v1046 = vsel %vm1036, %v1040, %v1044
        %v1047 = vsel %vm1037, %v1041, %v1045
        %v1048 = vmul.f32 %v1038, %v1033
        %v1049 = vmul.f32 %v1039, %v1035
        %v1050 = vadd.f32 %v1040, %v1048
        %v1051 = vadd.f32 %v1041, %v1049
        %v1052 = vadd.f32 %v1044, 2.0
        %v1053 = vadd.f32 %v1045, 2.0
        %v1054 = vsel %vm1036, %v1050, %v1052
        %v1055 = vsel %vm1037, %v1051, %v1053
        %v1056 = vmul.f32 %v1024, %v1046
        %v1057 = vmul.f32 %v1026, %v1047
        %v1058 = vrcp.pop %v1054
        %v1059 = vrcp.pop %v1055
        %v1060 = vmul.f32 %v1056, %v1058
        %v1061 = vmul.f32 %v1057, %v1059
        %v1062 = vand.u32 2147483647, %v1060
        %v1063 = vand.u32 2147483647, %v1061
        %v1064 = vsub.f32 0.0, %v1062
        %v1065 = vsub.f32 0.0, %v1063
        %v1066 = vmul.f32 %v1064, 1.442695
        %v1067 = vpow.pop %v1066
        %v1068 = vmul.f32 %v1065, 1.442695
        %v1069 = vpow.pop %v1068
        %vm1070 = vcmp.ge.f32.partialorder %v1060, 0.0
        %vm1071 = vcmp.ge.f32.partialorder %v1061, 0.0
        %v1072 = vsel %vm1070, 1.0, %v1067
        %v1073 = vsel %vm1071, 1.0, %v1069
        %v1074 = vadd.f32 %v1067, 1.0
        %v1075 = vadd.f32 %v1069, 1.0
        %v1076 = vrcp.pop %v1074
        %v1077 = vrcp.pop %v1075
        %v1078 = vmul.f32 %v1072, %v1076
        %v1079 = vmul.f32 %v1073, %v1077
        %1082 = vrot.lane.b32.xlu0 %v1078, 96
        %v1083 = vpop.permute.xlu0 %1082
        %1084 = vrot.lane.b32.xlu0 %v1079, 96
        %v1085 = vpop.permute.xlu0 %1084
        %v1088 = vmul.f32 %v1060, %v1083
        %v1089 = vmul.f32 %v1061, %v1085
        %v1090 = vadd.f32 %v858, %v1088
        %v1091 = vadd.f32 %v859, %v1089
        %v1092 = vpack.c.bf16 %v1091, %v1090
        %v1093 = vld [vmem:[%s6] sm:$0xf]
        %v1094 = vld [vmem:[%s6 + $0x4] sm:$0xf]
        %v1095 = vld [vmem:[%s6 + $0x8] sm:$0xf]
        %v1096 = vld [vmem:[%s6 + $0xc] sm:$0xf]
        %v1101 = vunpack.c.l.b16 %v1093
        %v1102 = vunpack.c.l.b16 %v1094
        %v1103 = vunpack.c.l.b16 %v1095
        %v1104 = vunpack.c.l.b16 %v1096
        %v1105 = vpack.c.b16 %v1102, %v1101
        %v1106 = vpack.c.b16 %v1104, %v1103
        %v1110 = vsel %vm501, %v1092, 0
        %1112 = vmatpush.bf16.msra.mxu0 0
        %1113 = vmatpush.bf16.msra.mxu0 0
        %1114 = vmatpush.bf16.msra.mxu0 0
        %1115 = vmatpush.bf16.msra.mxu0 0
        %1116 = vmatpush.bf16.msra.mxu0 0
        %1117 = vmatpush.bf16.msra.mxu0 0
        %1118 = vmatpush.bf16.msra.mxu0 %v1106
        %1119 = vmatpush.bf16.msra.mxu0 %v1105
        %1120 = vmatmul.bf16.gmra.mxu0 %v1110
        %v1121 = vpop.f32.mrf.mxu0
        %v1122 = vadd.f32 0.0, %v1121
        %v1123 = vpop.f32.mrf.mxu0
        %v1124 = vadd.f32 0.0, %v1123
        %1125 = vdwg.mxu0
        %v1126 = vld [vmem:[%s7] sm:$0xf]
        %v1127 = vld [vmem:[%s7 + $0x4] sm:$0xf]
        %v1128 = vld [vmem:[%s7 + $0x8] sm:$0xf]
        %v1129 = vld [vmem:[%s7 + $0xc] sm:$0xf]
        %v1134 = vunpack.c.l.b16 %v1126
        %v1135 = vunpack.c.l.b16 %v1127
        %v1136 = vunpack.c.l.b16 %v1128
        %v1137 = vunpack.c.l.b16 %v1129
        %v1138 = vpack.c.b16 %v1135, %v1134
        %v1139 = vpack.c.b16 %v1137, %v1136
        %1142 = vmatpush.bf16.msra.mxu0 0
        %1143 = vmatpush.bf16.msra.mxu0 0
        %1144 = vmatpush.bf16.msra.mxu0 0
        %1145 = vmatpush.bf16.msra.mxu0 0
        %1146 = vmatpush.bf16.msra.mxu0 0
        %1147 = vmatpush.bf16.msra.mxu0 0
        %1148 = vmatpush.bf16.msra.mxu0 %v1139
        %1149 = vmatpush.bf16.msra.mxu0 %v1138
        %1150 = vmatmul.bf16.gmra.mxu0 %v1110
        %v1151 = vpop.f32.mrf.mxu0
        %v1152 = vadd.f32 0.0, %v1151
        %v1153 = vpop.f32.mrf.mxu0
        %v1154 = vadd.f32 0.0, %v1153
        %1155 = vdwg.mxu0
        %v1156 = vld [vmem:[%s8] sm:$0xf]
        %v1157 = vld [vmem:[%s8 + $0x4] sm:$0xf]
        %v1158 = vld [vmem:[%s8 + $0x8] sm:$0xf]
        %v1159 = vld [vmem:[%s8 + $0xc] sm:$0xf]
        %v1164 = vunpack.c.l.b16 %v1156
        %v1165 = vunpack.c.l.b16 %v1157
        %v1166 = vunpack.c.l.b16 %v1158
        %v1167 = vunpack.c.l.b16 %v1159
        %v1168 = vpack.c.b16 %v1165, %v1164
        %v1169 = vpack.c.b16 %v1167, %v1166
        %1172 = vmatpush.bf16.msra.mxu0 0
        %1173 = vmatpush.bf16.msra.mxu0 0
        %1174 = vmatpush.bf16.msra.mxu0 0
        %1175 = vmatpush.bf16.msra.mxu0 0
        %1176 = vmatpush.bf16.msra.mxu0 0
        %1177 = vmatpush.bf16.msra.mxu0 0
        %1178 = vmatpush.bf16.msra.mxu0 %v1169
        %1179 = vmatpush.bf16.msra.mxu0 %v1168
        %1180 = vmatmul.bf16.gmra.mxu0 %v1110
        %v1181 = vpop.f32.mrf.mxu0
        %v1182 = vadd.f32 0.0, %v1181
        %v1183 = vpop.f32.mrf.mxu0
        %v1184 = vadd.f32 0.0, %v1183
        %1185 = vdwg.mxu0
        %v1186 = vpack.c.bf16 %v1122, %v1122
        %v1187 = vpack.c.bf16 %v1124, %v1124
        %v1188 = vpack.c.bf16 %v1152, %v1152
        %v1189 = vpack.c.bf16 %v1154, %v1154
        %v1190 = vpack.c.bf16 %v1182, %v1182
        %v1191 = vpack.c.bf16 %v1184, %v1184
        %v1194 = vunpack.c.l.b16 %v1186
        %v1195 = vunpack.c.l.b16 %v1187
        %v1196 = vpack.c.b16 %v1195, %v1194
        %v1199 = vunpack.c.l.b16 %v1188
        %v1200 = vunpack.c.l.b16 %v1189
        %v1201 = vpack.c.b16 %v1200, %v1199
        %v1203 = vsel %vm466, %v1196, 0
        %v1206 = vsel %vm466, %v1201, 0
        %1208 = vmatpush.bf16.xpose.msra.mxu0 0
        %1209 = vmatpush.bf16.xpose.msra.mxu0 0
        %1210 = vmatpush.bf16.xpose.msra.mxu0 0
        %1211 = vmatpush.bf16.xpose.msra.mxu0 0
        %1212 = vmatpush.bf16.xpose.msra.mxu0 0
        %1213 = vmatpush.bf16.xpose.msra.mxu0 0
        %1214 = vmatpush.bf16.xpose.msra.mxu0 0
        %1215 = vmatpush.bf16.xpose.msra.mxu0 %v1206
        %1216 = vmatmul.bf16.gmra.mxu0 %v1203
        %v1217 = vpop.f32.mrf.mxu0
        %v1218 = vadd.f32 0.0, %v1217
        %v1219 = vpop.f32.mrf.mxu0
        %v1220 = vadd.f32 0.0, %v1219
        %1221 = vdwg.mxu0
        %v1222 = vmul.f32 %v1218, 0.25
        %v1223 = vmul.f32 %v1220, 0.25
        %v1225 = vperm.slane %v456, 0
        %v1227 = vadd.f32 %v1222, %v1225
        %v1228 = vadd.f32 %v1223, %v1225
        %v1229 = vsel %vm466, %v1227, -inf
        %1230 = vmax.xlane.f32.xlu0 %v1229
        %v1231 = vpop.xlane.xlu0 %1230
        %v1232 = vsel %vm466, %v1228, -inf
        %1233 = vmax.xlane.f32.xlu0 %v1232
        %v1234 = vpop.xlane.xlu0 %1233
        %v1235 = vsub.f32 %v1227, %v1231
        %v1236 = vsub.f32 %v1228, %v1234
        %v1237 = vmul.f32 %v1235, 1.442695
        %v1238 = vpow.pop %v1237
        %v1239 = vmul.f32 %v1236, 1.442695
        %v1240 = vpow.pop %v1239
        %v1241 = vsel %vm466, %v1238, 0.0
        %1242 = vadd.xlane.f32.xlu0 %v1241
        %v1243 = vpop.xlane.xlu0 %1242
        %v1244 = vsel %vm466, %v1240, 0.0
        %1245 = vadd.xlane.f32.xlu0 %v1244
        %v1246 = vpop.xlane.xlu0 %1245
        %v1247 = vrcp.pop %v1243
        %v1248 = vrcp.pop %v1246
        %v1249 = vmul.f32 %v1238, %v1247
        %v1250 = vmul.f32 %v1240, %v1248
        %v1251 = vpack.c.bf16 %v1250, %v1249
        %v1254 = vunpack.c.l.b16 %v1190
        %v1255 = vunpack.c.l.b16 %v1191
        %v1256 = vpack.c.b16 %v1255, %v1254
        %v1259 = vsel %vm466, %v1251, 0
        %1261 = vmatpush.bf16.msra.mxu0 0
        %1262 = vmatpush.bf16.msra.mxu0 0
        %1263 = vmatpush.bf16.msra.mxu0 0
        %1264 = vmatpush.bf16.msra.mxu0 0
        %1265 = vmatpush.bf16.msra.mxu0 0
        %1266 = vmatpush.bf16.msra.mxu0 0
        %1267 = vmatpush.bf16.msra.mxu0 0
        %1268 = vmatpush.bf16.msra.mxu0 %v1256
        %1269 = vmatmul.bf16.gmra.mxu0 %v1259
        %v1270 = vpop.f32.mrf.mxu0
        %v1271 = vadd.f32 0.0, %v1270
        %v1272 = vpop.f32.mrf.mxu0
        %v1273 = vadd.f32 0.0, %v1272
        %1274 = vdwg.mxu0
        %1275 = vrot.lane.b32.xlu0 %v1196, 112
        %v1276 = vpop.permute.xlu0 %1275
        %1277 = vrot.lane.b32.xlu0 %v1201, 112
        %v1278 = vpop.permute.xlu0 %1277
        %v1280 = vsel %vm466, %v1276, 0
        %v1283 = vsel %vm466, %v1278, 0
        %1285 = vmatpush.bf16.xpose.msra.mxu0 0
        %1286 = vmatpush.bf16.xpose.msra.mxu0 0
        %1287 = vmatpush.bf16.xpose.msra.mxu0 0
        %1288 = vmatpush.bf16.xpose.msra.mxu0 0
        %1289 = vmatpush.bf16.xpose.msra.mxu0 0
        %1290 = vmatpush.bf16.xpose.msra.mxu0 0
        %1291 = vmatpush.bf16.xpose.msra.mxu0 0
        %1292 = vmatpush.bf16.xpose.msra.mxu0 %v1283
        %1293 = vmatmul.bf16.gmra.mxu0 %v1280
        %v1294 = vpop.f32.mrf.mxu0
        %v1295 = vadd.f32 0.0, %v1294
        %v1296 = vpop.f32.mrf.mxu0
        %v1297 = vadd.f32 0.0, %v1296
        %1298 = vdwg.mxu0
        %v1299 = vmul.f32 %v1295, 0.25
        %v1300 = vmul.f32 %v1297, 0.25
        %v1301 = vadd.f32 %v1299, %v1225
        %v1302 = vadd.f32 %v1300, %v1225
        %v1303 = vsel %vm466, %v1301, -inf
        %1304 = vmax.xlane.f32.xlu0 %v1303
        %v1305 = vpop.xlane.xlu0 %1304
        %v1306 = vsel %vm466, %v1302, -inf
        %1307 = vmax.xlane.f32.xlu0 %v1306
        %v1308 = vpop.xlane.xlu0 %1307
        %v1309 = vsub.f32 %v1301, %v1305
        %v1310 = vsub.f32 %v1302, %v1308
        %v1311 = vmul.f32 %v1309, 1.442695
        %v1312 = vpow.pop %v1311
        %v1313 = vmul.f32 %v1310, 1.442695
        %v1314 = vpow.pop %v1313
        %v1315 = vsel %vm466, %v1312, 0.0
        %1316 = vadd.xlane.f32.xlu0 %v1315
        %v1317 = vpop.xlane.xlu0 %1316
        %v1318 = vsel %vm466, %v1314, 0.0
        %1319 = vadd.xlane.f32.xlu0 %v1318
        %v1320 = vpop.xlane.xlu0 %1319
        %v1321 = vrcp.pop %v1317
        %v1322 = vrcp.pop %v1320
        %v1323 = vmul.f32 %v1312, %v1321
        %v1324 = vmul.f32 %v1314, %v1322
        %v1325 = vpack.c.bf16 %v1324, %v1323
        %1326 = vrot.lane.b32.xlu0 %v1256, 112
        %v1327 = vpop.permute.xlu0 %1326
        %v1330 = vsel %vm466, %v1325, 0
        %1332 = vmatpush.bf16.msra.mxu0 0
        %1333 = vmatpush.bf16.msra.mxu0 0
        %1334 = vmatpush.bf16.msra.mxu0 0
        %1335 = vmatpush.bf16.msra.mxu0 0
        %1336 = vmatpush.bf16.msra.mxu0 0
        %1337 = vmatpush.bf16.msra.mxu0 0
        %1338 = vmatpush.bf16.msra.mxu0 0
        %1339 = vmatpush.bf16.msra.mxu0 %v1327
        %1340 = vmatmul.bf16.gmra.mxu0 %v1330
        %v1341 = vpop.f32.mrf.mxu0
        %v1342 = vadd.f32 0.0, %v1341
        %v1343 = vpop.f32.mrf.mxu0
        %v1344 = vadd.f32 0.0, %v1343
        %1345 = vdwg.mxu0
        %1348 = vrot.lane.b32.xlu0 %v1342, 16
        %v1349 = vpop.permute.xlu0 %1348
        %1350 = vrot.lane.b32.xlu0 %v1344, 16
        %v1351 = vpop.permute.xlu0 %1350
        %v1354 = vsel %vm466, %v1271, %v1349
        %v1355 = vsel %vm466, %v1273, %v1351
        %v1356 = vpack.c.bf16 %v1355, %v1354
        %v1357 = vld [vmem:[%s9] sm:$0xf]
        %v1358 = vld [vmem:[%s9 + $0x4] sm:$0xf]
        %v1359 = vld [vmem:[%s9 + $0x8] sm:$0xf]
        %v1360 = vld [vmem:[%s9 + $0xc] sm:$0xf]
        %v1365 = vunpack.c.l.b16 %v1357
        %v1366 = vunpack.c.l.b16 %v1358
        %v1367 = vunpack.c.l.b16 %v1359
        %v1368 = vunpack.c.l.b16 %v1360
        %v1369 = vpack.c.b16 %v1366, %v1365
        %v1370 = vpack.c.b16 %v1368, %v1367
        %v1374 = vsel %vm501, %v1356, 0
        %1376 = vmatpush.bf16.msra.mxu0 0
        %1377 = vmatpush.bf16.msra.mxu0 0
        %1378 = vmatpush.bf16.msra.mxu0 0
        %1379 = vmatpush.bf16.msra.mxu0 0
        %1380 = vmatpush.bf16.msra.mxu0 0
        %1381 = vmatpush.bf16.msra.mxu0 0
        %1382 = vmatpush.bf16.msra.mxu0 %v1370
        %1383 = vmatpush.bf16.msra.mxu0 %v1369
        %1384 = vmatmul.bf16.gmra.mxu0 %v1374
        %v1385 = vpop.f32.mrf.mxu0
        %v1386 = vadd.f32 %v1090, %v1385
        %v1387 = vpop.f32.mrf.mxu0
        %v1388 = vadd.f32 %v1091, %v1387
        %1389 = vdwg.mxu0
        %v1390 = vsel %vm501, %v1386, 0.0
        %1391 = vadd.xlane.f32.xlu0 %v1390
        %v1392 = vpop.xlane.xlu0 %1391
        %v1393 = vsel %vm501, %v1388, 0.0
        %1394 = vadd.xlane.f32.xlu0 %v1393
        %v1395 = vpop.xlane.xlu0 %1394
        %v1396 = vrcp.pop 32.0
        %v1397 = vmul.f32 32.0, %v1396
        %v1398 = vsub.f32 1.0, %v1397
        %v1399 = vmul.f32 %v1396, %v1398
        %v1400 = vadd.f32 %v1396, %v1399
        %vm1401 = vweird.f32 %v1396
        %v1402 = vsel %vm1401, %v1396, %v1400
        %v1403 = vmul.f32 %v1392, %v1402
        %v1404 = vmul.f32 %v1395, %v1402
        %v1405 = vsub.f32 %v1386, %v1403
        %v1406 = vsub.f32 %v1388, %v1404
        %v1407 = vmul.f32 %v1405, %v1405
        %v1408 = vmul.f32 %v1406, %v1406
        %v1409 = vsel %vm501, %v1407, 0.0
        %1410 = vadd.xlane.f32.xlu0 %v1409
        %v1411 = vpop.xlane.xlu0 %1410
        %v1412 = vsel %vm501, %v1408, 0.0
        %1413 = vadd.xlane.f32.xlu0 %v1412
        %v1414 = vpop.xlane.xlu0 %1413
        %v1415 = vmul.f32 %v1411, %v1402
        %v1416 = vmul.f32 %v1414, %v1402
        %v1417 = vadd.f32 %v1415, 1e-05
        %v1418 = vadd.f32 %v1416, 1e-05
        %v1419 = vrsqrt.pop %v1417
        %v1420 = vmul.f32 %v1419, %v1417
        %v1421 = vmul.f32 %v1420, %v1419
        %v1422 = vmul.f32 0.5, %v1421
        %v1423 = vsub.f32 1.5, %v1422
        %v1424 = vmul.f32 %v1419, %v1423
        %vm1425 = vweird.f32 %v1417
        %vm1426 = vweird.f32 %v1419
        %vm1427 = vmor %vm1425, %vm1426
        %v1428 = vsel %vm1427, %v1419, %v1424
        %v1429 = vrsqrt.pop %v1418
        %v1430 = vmul.f32 %v1429, %v1418
        %v1431 = vmul.f32 %v1430, %v1429
        %v1432 = vmul.f32 0.5, %v1431
        %v1433 = vsub.f32 1.5, %v1432
        %v1434 = vmul.f32 %v1429, %v1433
        %vm1435 = vweird.f32 %v1418
        %vm1436 = vweird.f32 %v1429
        %vm1437 = vmor %vm1435, %vm1436
        %v1438 = vsel %vm1437, %v1429, %v1434
        %v1439 = vmul.f32 %v1405, %v1428
        %v1440 = vmul.f32 %v1406, %v1438
        %v1441 = vld [vmem:[%s10] sm:$0x1]
        %v1443 = vperm.slane %v1441, 0
        %v1445 = vmul.f32 %v1439, %v1443
        %v1446 = vmul.f32 %v1440, %v1443
        %v1447 = vadd.f32 %v1090, %v1445
        %v1448 = vadd.f32 %v1091, %v1446
        %v1449 = vld [vmem:[%s11] sm:$0x1]
        %v1451 = vperm.slane %v1449, 0
        %v1453 = vadd.f32 %v1447, %v1451
        %v1454 = vadd.f32 %v1448, %v1451
        %v1455 = vsel %vm501, %v1453, 0.0
        %v1456 = vsel %vm501, %v1454, 0.0
        %v1457 = vadd.f32 %v1455, %v1456
        %v1458 = vrot.slane %v1457, 4
        %v1459 = vadd.f32 %v1457, %v1458
        %v1460 = vrot.slane %v1459, 2
        %v1461 = vadd.f32 %v1459, %v1460
        %v1462 = vrot.slane %v1461, 1
        %v1463 = vadd.f32 %v1461, %v1462
        %v1464 = vrcp.pop 16.0
        %v1465 = vmul.f32 16.0, %v1464
        %v1466 = vsub.f32 1.0, %v1465
        %v1467 = vmul.f32 %v1464, %v1466
        %v1468 = vadd.f32 %v1464, %v1467
        %vm1469 = vweird.f32 %v1464
        %v1470 = vsel %vm1469, %v1464, %v1468
        %v1471 = vmul.f32 %v1463, %v1470
        %v1472 = vpack.c.bf16 %v1471, %v1471
        %v1473 = vld [vmem:[%s12] sm:$0xf]
        %v1474 = vld [vmem:[%s12 + $0x4] sm:$0xf]
        %v1475 = vld [vmem:[%s12 + $0x8] sm:$0xf]
        %v1476 = vld [vmem:[%s12 + $0xc] sm:$0xf]
        %v1481 = vunpack.c.l.b16 %v1473
        %v1482 = vunpack.c.l.b16 %v1474
        %v1483 = vunpack.c.l.b16 %v1475
        %v1484 = vunpack.c.l.b16 %v1476
        %v1485 = vpack.c.b16 %v1482, %v1481
        %v1486 = vpack.c.b16 %v1484, %v1483
        %v1490 = vsel %vm501, %v1472, 0
        %1492 = vmatpush.bf16.msra.mxu0 0
        %1493 = vmatpush.bf16.msra.mxu0 0
        %1494 = vmatpush.bf16.msra.mxu0 0
        %1495 = vmatpush.bf16.msra.mxu0 0
        %1496 = vmatpush.bf16.msra.mxu0 0
        %1497 = vmatpush.bf16.msra.mxu0 0
        %1498 = vmatpush.bf16.msra.mxu0 %v1486
        %1499 = vmatpush.bf16.msra.mxu0 %v1485
        %1500 = vmatmul.bf16.gmra.mxu0 %v1490
        %v1501 = vpop.f32.mrf.mxu0
        %v1502 = vadd.f32 0.0, %v1501
        %v1503 = vpop.f32.mrf.mxu0
        %1504 = vdwg.mxu0
        %vm1505 = vcmask 253952
        %1506 = vst.msk [vmem:[%s443] sm:$0x1] %vm1505, %v1502
        %s1507 = sand.u32 %s318, 1
        %s1508 = scalar_lea.sflag [#allocation3], %s1507
        %s1509 = sand.u32 %s318, 1
        %s1510 = scalar_lea.vmem [#allocation2], %s1509
        // Predicated region
        $region73: #{tpu_custom_call.1} parent=71 // pred_check
          %p1511 = pneg %p328
        $region74: #{tpu_custom_call.1} parent=71 // pred_check_branch
          %1513 = sbr.rel (%p1511) target = $region76
        $region75: #{tpu_custom_call.1} parent=71 // pred_region
          %1515 = vsyncadd %s1508, 0
          %s1516 = scalar_lea.hbm %s13, %s27
          %s1518 = sshll.u32 %s1510, 4
          %s1519 = int_to_ptr.vmem [resolvable:$true] %s1518
          %s1520 = sshll.u32 %s1516, 4
          %s1521 = int_to_ptr.hbm [resolvable:$true] %s1520
          %1523 = dma.vmem_to_hbm [thread:$0]  %s1519, 16, %s1521, %s1508
        $region76: #{tpu_custom_call.1} parent=71 // pred_fallthru
          _
      $region72: #{tpu_custom_call.1} parent=5 // pred_fallthru
        _
      %p1524 = scmp.le.s32.totalorder 2, %s22
      // Predicated region
      $region77: #{tpu_custom_call.1} parent=5 // pred_check
        %p1525 = pneg %p1524
      $region78: #{tpu_custom_call.1} parent=5 // pred_check_branch
        %1527 = sbr.rel (%p1525) target = $region80
      $region79: #{tpu_custom_call.1} parent=5 // pred_region
        %s1528 = ssub.s32 %s22, 2
        // Predicated region
        $region81: #{tpu_custom_call.1} parent=79 // pred_check
          %p1529 = pneg %p334
        $region82: #{tpu_custom_call.1} parent=79 // pred_check_branch
          %1531 = sbr.rel (%p1529) target = $region84
        $region83: #{tpu_custom_call.1} parent=79 // pred_region
          %s1532 = sand.u32 %s319, 1
          %s1533 = scalar_lea.sflag [#allocation3], %s1532
          %s1534 = sand.u32 %s319, 1
          %s1535 = scalar_lea.vmem [#allocation2], %s1534
          %1537 = dma.done %s1533, 16
        $region84: #{tpu_custom_call.1} parent=79 // pred_fallthru
          _
      $region80: #{tpu_custom_call.1} parent=5 // pred_fallthru
        _
    $region6: #{tpu_custom_call.1} parent=1 // loop_footer
      %s26 = sadd.s32 1, %s22
    $region7: #{tpu_custom_call.1} parent=1 // loop_footer_branch
      %21 = sbr.rel target = $region3
    $region8: #{tpu_custom_call.1} parent=1 // loop_exit
      _
    %1538 = vsyncpa [#allocation3], 1
    %s1539 = scalar_lea.sflag [#allocation3], 1
    %1540 = vsyncpa %s1539, 1

</llo_original>
